<compile_context>
chip_gen: v6e
topology: v6e:2x2x1
jax: 0.10.0
libtpu: 0.0.40
codegen_flags: <defaults>
</compile_context>

<pallas_src>
import math

import jax
import jax.numpy as jnp
from jax.experimental import pallas as pl
from jax.experimental.pallas import tpu as pltpu

D_IN = 32 * 32      # 1024
D_HID = 16 * 16     # 256
D_OUT = 32 * 32     # 1024


def _mlp_kernel(x_ref, w1_ref, b1_ref, w2_ref, b2_ref, w3_ref, b3_ref, o_ref):
    # Three Linear layers fused (no nonlinearity, matching the PyTorch module).
    # bf16 matmul inputs (MXU-native on v5e/v6e/v7x), f32 accumulation, f32 bias.
    x = x_ref[...].astype(jnp.bfloat16)
    h1 = jnp.dot(x, w1_ref[...], preferred_element_type=jnp.float32) + b1_ref[...]
    h2 = jnp.dot(h1.astype(jnp.bfloat16), w2_ref[...],
                 preferred_element_type=jnp.float32) + b2_ref[...]
    y = jnp.dot(h2.astype(jnp.bfloat16), w3_ref[...],
                preferred_element_type=jnp.float32) + b3_ref[...]
    o_ref[...] = y.astype(o_ref.dtype)


def _round_up(n, m):
    return -(-n // m) * m


def _choose_tile_b(B):
    if B <= 128:
        # One tile covers the whole batch; ragged/masked rows cost nothing.
        return _round_up(B, 8)
    # B > 128: guarantee >= 4 grid steps on the "parallel" batch axis so v7x's
    # two TensorCores both get work; cap at 512 rows so per-step DMA stays near
    # the HBM roofline on single-TC chips (v5e/v6e).
    tile = _round_up(pl.cdiv(B, 4), 8)
    return min(512, tile)


def linear_network_forward(x, kernel_params, *, tile_b=None):
    """x: (B, 1, 32, 32) float32 -> (B, 1, 32, 32) float32.

    kernel_params must come from prepare_params() (bf16 weights, (1, D) f32
    biases) so no per-call casts run inside this (jitted) function.
    """
    w1b, b1_2d, w2b, b2_2d, w3b, b3_2d = kernel_params
    B = x.shape[0]
    if tile_b is None:
        tile_b = _choose_tile_b(B)

    x2d = x.reshape(B, D_IN)
    grid = (pl.cdiv(B, tile_b),)   # ragged final block handled by Pallas masking

    # Only needed once tiles get big (review: v5e scoped default is 16 MiB,
    # v7x physical VMEM is 64 MiB); weights are constant across the grid, so
    # they can be single-buffered to save VMEM.
    big_tile = tile_b >= 512
    const_mode = {"pipeline_mode": pl.Buffered(1)} if big_tile else {}
    compiler_params = pltpu.CompilerParams(
        dimension_semantics=("parallel",),
        vmem_limit_bytes=(48 << 20) if big_tile else None,
    )

    out2d = pl.pallas_call(
        _mlp_kernel,
        out_shape=jax.ShapeDtypeStruct((B, D_OUT), jnp.float32),
        grid_spec=pltpu.PrefetchScalarGridSpec(
            num_scalar_prefetch=0,
            grid=grid,
            in_specs=[
                pl.BlockSpec((tile_b, D_IN), lambda i: (i, 0)),              # x tile
                pl.BlockSpec((D_IN, D_HID), lambda i: (0, 0), **const_mode),   # W1 (bf16)
                pl.BlockSpec((1, D_HID), lambda i: (0, 0), **const_mode),      # b1
                pl.BlockSpec((D_HID, D_HID), lambda i: (0, 0), **const_mode),  # W2 (bf16)
                pl.BlockSpec((1, D_HID), lambda i: (0, 0), **const_mode),      # b2
                pl.BlockSpec((D_HID, D_OUT), lambda i: (0, 0), **const_mode),  # W3 (bf16)
                pl.BlockSpec((1, D_OUT), lambda i: (0, 0), **const_mode),      # b3
            ],
            out_specs=pl.BlockSpec((tile_b, D_OUT), lambda i: (i, 0)),
        ),
        compiler_params=compiler_params,
    )(x2d, w1b, b1_2d, w2b, b2_2d, w3b, b3_2d)

    return out2d.reshape(B, 1, 32, 32)


def init_params(key):
    """PyTorch nn.Linear default init: U(-1/sqrt(fan_in), 1/sqrt(fan_in)).

    Weights are (in_features, out_features) so the kernel computes x @ W + b
    (transposed relative to PyTorch's (out, in) storage; same math).
    """
    dims = [(D_IN, D_HID), (D_HID, D_HID), (D_HID, D_OUT)]
    params = []
    for (fan_in, fan_out) in dims:
        key, kw, kb = jax.random.split(key, 3)
        bound = 1.0 / math.sqrt(fan_in)
        w = jax.random.uniform(kw, (fan_in, fan_out), jnp.float32, -bound, bound)
        b = jax.random.uniform(kb, (fan_out,), jnp.float32, -bound, bound)
        params += [w, b]
    return tuple(params)


def prepare_params(params):
    """One-time, outside-jit conversion to the kernel's resident formats:
    bf16 weights (halves weight HBM traffic, MXU-native inputs) and f32 biases
    reshaped to (1, D) for in-kernel broadcast."""
    w1, b1, w2, b2, w3, b3 = params
    return (
        w1.astype(jnp.bfloat16), b1.reshape(1, D_HID).astype(jnp.float32),
        w2.astype(jnp.bfloat16), b2.reshape(1, D_HID).astype(jnp.float32),
        w3.astype(jnp.bfloat16), b3.reshape(1, D_OUT).astype(jnp.float32),
    )


def _ref_forward_f32(x, params):
    w1, b1, w2, b2, w3, b3 = params
    h = x.reshape(x.shape[0], D_IN)
    h = h @ w1 + b1
    h = h @ w2 + b2
    h = h @ w3 + b3
    return h.reshape(x.shape[0], 1, 32, 32)


def _ref_forward_bf16(x, params):
    # Same bf16-input / f32-accumulate math as the kernel, in plain JAX.
    w1, b1, w2, b2, w3, b3 = params
    h = x.reshape(x.shape[0], D_IN)
    h = jnp.dot(h.astype(jnp.bfloat16), w1.astype(jnp.bfloat16),
                preferred_element_type=jnp.float32) + b1
    h = jnp.dot(h.astype(jnp.bfloat16), w2.astype(jnp.bfloat16),
                preferred_element_type=jnp.float32) + b2
    h = jnp.dot(h.astype(jnp.bfloat16), w3.astype(jnp.bfloat16),
                preferred_element_type=jnp.float32) + b3
    return h.reshape(x.shape[0], 1, 32, 32)


if __name__ == "__main__":
    key = jax.random.PRNGKey(0)
    key, kx = jax.random.split(key)

    params_f32 = init_params(key)
    # Hoisted one-time cast (review item 1): happens once, outside the jit.
    kernel_params = prepare_params(params_f32)

    forward = jax.jit(linear_network_forward, static_argnames=("tile_b",))

    # Small deterministic check: batch=2 (single ragged block, masked writes).
    batch = 2
    x = jax.random.normal(kx, (batch, 1, 32, 32), jnp.float32)
    out = jax.block_until_ready(forward(x, kernel_params))
    assert out.shape == (batch, 1, 32, 32)
    assert jnp.allclose(out, _ref_forward_bf16(x, params_f32),
                        atol=5e-3, rtol=5e-3), "bf16-path mismatch"
    assert jnp.allclose(out, _ref_forward_f32(x, params_f32),
                        atol=5e-2, rtol=5e-2), "f32 reference mismatch"

    # Ragged multi-step path: B=13 with tile_b=8 -> 2 grid steps, last block
    # partially masked (validates removal of the jnp.pad pass).
    key, kx2 = jax.random.split(key)
    x_odd = jax.random.normal(kx2, (13, 1, 32, 32), jnp.float32)
    out_odd = jax.block_until_ready(forward(x_odd, kernel_params, tile_b=8))
    assert out_odd.shape == (13, 1, 32, 32)
    assert jnp.allclose(out_odd, _ref_forward_f32(x_odd, params_f32),
                        atol=5e-2, rtol=5e-2), "ragged-batch mismatch"

    print("KERNEL_OK")
</pallas_src>

<mosaic_0001>
module attributes {stable_mosaic.version = 11 : i64} {
  func.func @_mlp_kernel(%arg0: i32, %arg1: memref<8x1024xf32, #tpu.memory_space<vmem>>, %arg2: memref<1024x256xbf16, #tpu.memory_space<vmem>>, %arg3: memref<1x256xf32, #tpu.memory_space<vmem>>, %arg4: memref<256x256xbf16, #tpu.memory_space<vmem>>, %arg5: memref<1x256xf32, #tpu.memory_space<vmem>>, %arg6: memref<256x1024xbf16, #tpu.memory_space<vmem>>, %arg7: memref<1x1024xf32, #tpu.memory_space<vmem>>, %arg8: memref<8x1024xf32, #tpu.memory_space<vmem>>) attributes {dimension_semantics = [#tpu.dimension_semantics<parallel>], iteration_bounds = array<i64: 1>, scalar_prefetch = 0 : i64, scratch_operands = 0 : i64, tpu.core_type = #tpu.core_type<tc>, window_params = [{transform_indices = @transform_0, window_bounds = array<i64: 8, 1024>}, {pipeline_mode = #tpu.pipeline_mode<synchronous>, transform_indices = @transform_1, window_bounds = array<i64: 1024, 256>}, {pipeline_mode = #tpu.pipeline_mode<synchronous>, transform_indices = @transform_2, window_bounds = array<i64: 1, 256>}, {pipeline_mode = #tpu.pipeline_mode<synchronous>, transform_indices = @transform_3, window_bounds = array<i64: 256, 256>}, {pipeline_mode = #tpu.pipeline_mode<synchronous>, transform_indices = @transform_4, window_bounds = array<i64: 1, 256>}, {pipeline_mode = #tpu.pipeline_mode<synchronous>, transform_indices = @transform_5, window_bounds = array<i64: 256, 1024>}, {pipeline_mode = #tpu.pipeline_mode<synchronous>, transform_indices = @transform_6, window_bounds = array<i64: 1, 1024>}, {transform_indices = @transform_7, window_bounds = array<i64: 8, 1024>}]} {
    %c0 = arith.constant 0 : index
    %c0_0 = arith.constant 0 : index
    %0 = vector.load %arg1[%c0, %c0_0] : memref<8x1024xf32, #tpu.memory_space<vmem>>, vector<8x1024xf32>
    %1 = arith.truncf %0 : vector<8x1024xf32> to vector<8x1024xbf16>
    %c0_1 = arith.constant 0 : index
    %c0_2 = arith.constant 0 : index
    %2 = vector.load %arg2[%c0_1, %c0_2] : memref<1024x256xbf16, #tpu.memory_space<vmem>>, vector<1024x256xbf16>
    %cst = arith.constant dense<0.000000e+00> : vector<8x256xf32>
    %3 = tpu.matmul %1, %2, %cst {dimension_numbers = #tpu.dot_dimension_numbers<[1], [0], [0], [1], [0, 0, 1, 1], [], []>} : vector<8x1024xbf16>, vector<1024x256xbf16>, vector<8x256xf32> -> vector<8x256xf32>
    %c0_3 = arith.constant 0 : index
    %c0_4 = arith.constant 0 : index
    %4 = vector.load %arg3[%c0_3, %c0_4] : memref<1x256xf32, #tpu.memory_space<vmem>>, vector<1x256xf32>
    %5 = vector.broadcast %4 : vector<1x256xf32> to vector<8x256xf32>
    %6 = arith.addf %3, %5 : vector<8x256xf32>
    %7 = arith.truncf %6 : vector<8x256xf32> to vector<8x256xbf16>
    %c0_5 = arith.constant 0 : index
    %c0_6 = arith.constant 0 : index
    %8 = vector.load %arg4[%c0_5, %c0_6] : memref<256x256xbf16, #tpu.memory_space<vmem>>, vector<256x256xbf16>
    %cst_7 = arith.constant dense<0.000000e+00> : vector<8x256xf32>
    %9 = tpu.matmul %7, %8, %cst_7 {dimension_numbers = #tpu.dot_dimension_numbers<[1], [0], [0], [1], [0, 0, 1, 1], [], []>} : vector<8x256xbf16>, vector<256x256xbf16>, vector<8x256xf32> -> vector<8x256xf32>
    %c0_8 = arith.constant 0 : index
    %c0_9 = arith.constant 0 : index
    %10 = vector.load %arg5[%c0_8, %c0_9] : memref<1x256xf32, #tpu.memory_space<vmem>>, vector<1x256xf32>
    %11 = vector.broadcast %10 : vector<1x256xf32> to vector<8x256xf32>
    %12 = arith.addf %9, %11 : vector<8x256xf32>
    %13 = arith.truncf %12 : vector<8x256xf32> to vector<8x256xbf16>
    %c0_10 = arith.constant 0 : index
    %c0_11 = arith.constant 0 : index
    %14 = vector.load %arg6[%c0_10, %c0_11] : memref<256x1024xbf16, #tpu.memory_space<vmem>>, vector<256x1024xbf16>
    %cst_12 = arith.constant dense<0.000000e+00> : vector<8x1024xf32>
    %15 = tpu.matmul %13, %14, %cst_12 {dimension_numbers = #tpu.dot_dimension_numbers<[1], [0], [0], [1], [0, 0, 1, 1], [], []>} : vector<8x256xbf16>, vector<256x1024xbf16>, vector<8x1024xf32> -> vector<8x1024xf32>
    %c0_13 = arith.constant 0 : index
    %c0_14 = arith.constant 0 : index
    %16 = vector.load %arg7[%c0_13, %c0_14] : memref<1x1024xf32, #tpu.memory_space<vmem>>, vector<1x1024xf32>
    %17 = vector.broadcast %16 : vector<1x1024xf32> to vector<8x1024xf32>
    %18 = arith.addf %15, %17 : vector<8x1024xf32>
    %c0_15 = arith.constant 0 : index
    %c0_16 = arith.constant 0 : index
    %19 = vector.load %arg8[%c0_15, %c0_16] : memref<8x1024xf32, #tpu.memory_space<vmem>>, vector<8x1024xf32>
    tpu.vector_store %arg8[%c0_15, %c0_16], %18 {strides = array<i32>} : memref<8x1024xf32, #tpu.memory_space<vmem>>, vector<8x1024xf32>,
    return
  }
  func.func @transform_0(%arg0: i32) -> (i32, i32) {
    %c0_i32 = arith.constant 0 : i32
    %c0_i32_0 = arith.constant 0 : i32
    return %arg0, %c0_i32 : i32, i32
  }
  func.func @transform_1(%arg0: i32) -> (i32, i32) {
    %c0_i32 = arith.constant 0 : i32
    %c0_i32_0 = arith.constant 0 : i32
    %c0_i32_1 = arith.constant 0 : i32
    return %c0_i32, %c0_i32_0 : i32, i32
  }
  func.func @transform_2(%arg0: i32) -> (i32, i32) {
    %c0_i32 = arith.constant 0 : i32
    %c0_i32_0 = arith.constant 0 : i32
    %c0_i32_1 = arith.constant 0 : i32
    return %c0_i32, %c0_i32_0 : i32, i32
  }
  func.func @transform_3(%arg0: i32) -> (i32, i32) {
    %c0_i32 = arith.constant 0 : i32
    %c0_i32_0 = arith.constant 0 : i32
    %c0_i32_1 = arith.constant 0 : i32
    return %c0_i32, %c0_i32_0 : i32, i32
  }
  func.func @transform_4(%arg0: i32) -> (i32, i32) {
    %c0_i32 = arith.constant 0 : i32
    %c0_i32_0 = arith.constant 0 : i32
    %c0_i32_1 = arith.constant 0 : i32
    return %c0_i32, %c0_i32_0 : i32, i32
  }
  func.func @transform_5(%arg0: i32) -> (i32, i32) {
    %c0_i32 = arith.constant 0 : i32
    %c0_i32_0 = arith.constant 0 : i32
    %c0_i32_1 = arith.constant 0 : i32
    return %c0_i32, %c0_i32_0 : i32, i32
  }
  func.func @transform_6(%arg0: i32) -> (i32, i32) {
    %c0_i32 = arith.constant 0 : i32
    %c0_i32_0 = arith.constant 0 : i32
    %c0_i32_1 = arith.constant 0 : i32
    return %c0_i32, %c0_i32_0 : i32, i32
  }
  func.func @transform_7(%arg0: i32) -> (i32, i32) {
    %c0_i32 = arith.constant 0 : i32
    %c0_i32_0 = arith.constant 0 : i32
    return %arg0, %c0_i32 : i32, i32
  }
}

</mosaic_0001>

<llo_original>
// kernel: linear_network_forward.1
$region0: #{linear_network_forward.1}
  #allocation0 [shape = 'u32[]', space=smem, size = 0x4, offset = 0x4, fixed_abs, tag = 'smem constant byte address 0x4 - core index']
  #allocation1 [shape = 'u32[144,128]{1,0:T(1,128)}', space=vmem, size = 0x12000, scoped, tag = 'internal scratch']
  %s0 = inlined_call_operand.vmem [shape: f32[2,1024], index: 0, kind: input, shape index: {}]
  %s1 = inlined_call_operand.hbm [shape: bf16[1024,256], index: 1, kind: input, shape index: {}]
  %s2 = inlined_call_operand.vmem [shape: f32[1,256], index: 2, kind: input, shape index: {}]
  %s3 = inlined_call_operand.hbm [shape: bf16[256,256], index: 3, kind: input, shape index: {}]
  %s4 = inlined_call_operand.vmem [shape: f32[1,256], index: 4, kind: input, shape index: {}]
  %s5 = inlined_call_operand.hbm [shape: bf16[256,1024], index: 5, kind: input, shape index: {}]
  %s6 = inlined_call_operand.vmem [shape: f32[1,1024], index: 6, kind: input, shape index: {}]
  %s7 = inlined_call_operand.vmem [shape: f32[2,1024], index: 7, kind: output, shape index: {}]
  %s8 = sld [smem:[#allocation0]]
  $region69: #{linear_network_forward.1} parent=0
    _
  %s10 = ssub.s32 1, %s8
  %s11 = scalar_select 0, %s10, %s8
  $region1: #{linear_network_forward.1} parent=0
    #allocation2 [shape = 'u8[524288]{0}', space=vmem, size = 0x80000, scoped, tag = 'input window, operand 1, single buffered']
    #allocation3 [shape = 's32[1]{0}', space=sflag, size = 0x4, scoped, tag = 'scoped memory for linear_network_forward.1']
    #allocation4 [shape = 'u8[131072]{0}', space=vmem, size = 0x20000, scoped, tag = 'input window, operand 3, single buffered']
    #allocation5 [shape = 's32[1]{0}', space=sflag, size = 0x4, scoped, tag = 'scoped memory for linear_network_forward.1']
    #allocation6 [shape = 'u8[524288]{0}', space=vmem, size = 0x80000, scoped, tag = 'input window, operand 5, single buffered']
    #allocation7 [shape = 'u8[32768]{0}', space=vmem, size = 0x8000, scoped, tag = 'output window, operand 0, single buffered']
    %12 = vsyncpa [#allocation3], 0
    %13 = vsyncpa [#allocation5], 0
    // Predicated region
    $region2: #{linear_network_forward.1} parent=1 // pred_check
      _
    $region3: #{linear_network_forward.1} parent=1 // pred_check_branch
      %15 = sbr.rel (0) target = $region5
    $region4: #{linear_network_forward.1} parent=1 // pred_region
      _
    $region5: #{linear_network_forward.1} parent=1 // pred_fallthru
      _
    // Predicated region
    $region6: #{linear_network_forward.1} parent=1 // pred_check
      _
    $region7: #{linear_network_forward.1} parent=1 // pred_check_branch
      %17 = sbr.rel (0) target = $region9
    $region8: #{linear_network_forward.1} parent=1 // pred_region
      %s19 = ssub.s32 16384, 16384
      %20 = vsyncadd [#allocation3], %s19
      %s21 = sshll.u32 [#allocation2], 4
      %s22 = int_to_ptr.vmem [resolvable:$true] %s21
      %27 = dma.hbm_to_vmem [thread:$0]  %s1, 16384, %s22, [#allocation3], 128, 128, 8
    $region9: #{linear_network_forward.1} parent=1 // pred_fallthru
      _
    // Predicated region
    $region10: #{linear_network_forward.1} parent=1 // pred_check
      _
    $region11: #{linear_network_forward.1} parent=1 // pred_check_branch
      %29 = sbr.rel (0) target = $region13
    $region12: #{linear_network_forward.1} parent=1 // pred_region
      _
    $region13: #{linear_network_forward.1} parent=1 // pred_fallthru
      _
    // Predicated region
    $region14: #{linear_network_forward.1} parent=1 // pred_check
      _
    $region15: #{linear_network_forward.1} parent=1 // pred_check_branch
      %31 = sbr.rel (0) target = $region17
    $region16: #{linear_network_forward.1} parent=1 // pred_region
      %s33 = ssub.s32 4096, 4096
      %34 = vsyncadd [#allocation5], %s33
      %s35 = sshll.u32 [#allocation4], 4
      %s36 = int_to_ptr.vmem [resolvable:$true] %s35
      %41 = dma.hbm_to_vmem [thread:$0]  %s3, 4096, %s36, [#allocation5], 128, 128, 8
    $region17: #{linear_network_forward.1} parent=1 // pred_fallthru
      _
    // Predicated region
    $region18: #{linear_network_forward.1} parent=1 // pred_check
      _
    $region19: #{linear_network_forward.1} parent=1 // pred_check_branch
      %43 = sbr.rel (0) target = $region21
    $region20: #{linear_network_forward.1} parent=1 // pred_region
      _
    $region21: #{linear_network_forward.1} parent=1 // pred_fallthru
      _
    // Predicated region
    $region22: #{linear_network_forward.1} parent=1 // pred_check
      _
    $region23: #{linear_network_forward.1} parent=1 // pred_check_branch
      %45 = sbr.rel (0) target = $region25
    $region24: #{linear_network_forward.1} parent=1 // pred_region
      %s47 = ssub.s32 16384, 16384
      %48 = vsyncadd [#allocation5], %s47
      %s49 = sshll.u32 [#allocation6], 4
      %s50 = int_to_ptr.vmem [resolvable:$true] %s49
      %55 = dma.hbm_to_vmem [thread:$0]  %s5, 16384, %s50, [#allocation5], 512, 512, 32
    $region25: #{linear_network_forward.1} parent=1 // pred_fallthru
      _
    // Predicated region
    $region26: #{linear_network_forward.1} parent=1 // pred_check
      _
    $region27: #{linear_network_forward.1} parent=1 // pred_check_branch
      %57 = sbr.rel (0) target = $region29
    $region28: #{linear_network_forward.1} parent=1 // pred_region
      _
    $region29: #{linear_network_forward.1} parent=1 // pred_fallthru
      _
    // Predicated region
    $region30: #{linear_network_forward.1} parent=1 // pred_check
      _
    $region31: #{linear_network_forward.1} parent=1 // pred_check_branch
      %59 = sbr.rel (0) target = $region33
    $region32: #{linear_network_forward.1} parent=1 // pred_region
      %60 = dma.done [#allocation3], 16384
    $region33: #{linear_network_forward.1} parent=1 // pred_fallthru
      _
    // Predicated region
    $region34: #{linear_network_forward.1} parent=1 // pred_check
      _
    $region35: #{linear_network_forward.1} parent=1 // pred_check_branch
      %62 = sbr.rel (0) target = $region37
    $region36: #{linear_network_forward.1} parent=1 // pred_region
      %63 = dma.done [#allocation5], 4096
    $region37: #{linear_network_forward.1} parent=1 // pred_fallthru
      _
    // Predicated region
    $region38: #{linear_network_forward.1} parent=1 // pred_check
      _
    $region39: #{linear_network_forward.1} parent=1 // pred_check_branch
      %65 = sbr.rel (0) target = $region41
    $region40: #{linear_network_forward.1} parent=1 // pred_region
      %66 = dma.done [#allocation5], 16384
    $region41: #{linear_network_forward.1} parent=1 // pred_fallthru
      _
    %v67 = vld [vmem:[%s0] sm:$0xff]
    %v68 = vld [vmem:[%s0 + $0x8] sm:$0xff]
    %v69 = vld [vmem:[%s0 + $0x10] sm:$0xff]
    %v70 = vld [vmem:[%s0 + $0x18] sm:$0xff]
    %v71 = vld [vmem:[%s0 + $0x20] sm:$0xff]
    %v72 = vld [vmem:[%s0 + $0x28] sm:$0xff]
    %v73 = vld [vmem:[%s0 + $0x30] sm:$0xff]
    %v74 = vld [vmem:[%s0 + $0x38] sm:$0xff]
    %v83 = vcombine.low %v67, %v69
    %v84 = vcombine.high %v67, %v69
    %v85 = vcombine.low %v71, %v73
    %v86 = vcombine.high %v71, %v73
    %v88 = vunpack.c.l.s4 1983009808
    %v89 = vunpack.c.0.s8 %v88
    %v90 = vlaneseq
    %v91 = vshrl.u32 %v90, 7
    %v92 = vsub.s32 %v89, %v91
    %v93 = vrot.slane %v83, %v92
    %v95 = vunpack.c.l.s4 1983009808
    %v96 = vunpack.c.0.s8 %v95
    %v97 = vlaneseq
    %v98 = vshrl.u32 %v97, 7
    %v99 = vsub.s32 %v96, %v98
    %v100 = vrot.slane %v84, %v99
    %v102 = vunpack.c.l.s4 1983009808
    %v103 = vunpack.c.0.s8 %v102
    %v104 = vlaneseq
    %v105 = vshrl.u32 %v104, 7
    %v106 = vsub.s32 %v103, %v105
    %v107 = vrot.slane %v85, %v106
    %v109 = vunpack.c.l.s4 1983009808
    %v110 = vunpack.c.0.s8 %v109
    %v111 = vlaneseq
    %v112 = vshrl.u32 %v111, 7
    %v113 = vsub.s32 %v110, %v112
    %v114 = vrot.slane %v86, %v113
    %v115 = vcombine.low %v93, %v107
    %v116 = vcombine.high %v93, %v107
    %v117 = vcombine.low %v100, %v114
    %v118 = vcombine.high %v100, %v114
    %v119 = vcombine.low %v68, %v70
    %v120 = vcombine.high %v68, %v70
    %v121 = vcombine.low %v72, %v74
    %v122 = vcombine.high %v72, %v74
    %v124 = vunpack.c.l.s4 1983009808
    %v125 = vunpack.c.0.s8 %v124
    %v126 = vlaneseq
    %v127 = vshrl.u32 %v126, 7
    %v128 = vsub.s32 %v125, %v127
    %v129 = vrot.slane %v119, %v128
    %v131 = vunpack.c.l.s4 1983009808
    %v132 = vunpack.c.0.s8 %v131
    %v133 = vlaneseq
    %v134 = vshrl.u32 %v133, 7
    %v135 = vsub.s32 %v132, %v134
    %v136 = vrot.slane %v120, %v135
    %v138 = vunpack.c.l.s4 1983009808
    %v139 = vunpack.c.0.s8 %v138
    %v140 = vlaneseq
    %v141 = vshrl.u32 %v140, 7
    %v142 = vsub.s32 %v139, %v141
    %v143 = vrot.slane %v121, %v142
    %v145 = vunpack.c.l.s4 1983009808
    %v146 = vunpack.c.0.s8 %v145
    %v147 = vlaneseq
    %v148 = vshrl.u32 %v147, 7
    %v149 = vsub.s32 %v146, %v148
    %v150 = vrot.slane %v122, %v149
    %v151 = vcombine.low %v129, %v143
    %v152 = vcombine.high %v129, %v143
    %v153 = vcombine.low %v136, %v150
    %v154 = vcombine.high %v136, %v150
    %v163 = vpack.c.bf16 %v115, %v115
    %v164 = vpack.c.bf16 %v116, %v116
    %v165 = vpack.c.bf16 %v117, %v117
    %v166 = vpack.c.bf16 %v118, %v118
    %v167 = vpack.c.bf16 %v151, %v151
    %v168 = vpack.c.bf16 %v152, %v152
    %v169 = vpack.c.bf16 %v153, %v153
    %v170 = vpack.c.bf16 %v154, %v154
    %v171 = vld [vmem:[#allocation2] sm:$0xff]
    %v172 = vld [vmem:[#allocation2 + $0x8] sm:$0xff]
    %v173 = vld [vmem:[#allocation2 + $0x10] sm:$0xff]
    %v174 = vld [vmem:[#allocation2 + $0x18] sm:$0xff]
    %v175 = vld [vmem:[#allocation2 + $0x20] sm:$0xff]
    %v176 = vld [vmem:[#allocation2 + $0x28] sm:$0xff]
    %v177 = vld [vmem:[#allocation2 + $0x30] sm:$0xff]
    %v178 = vld [vmem:[#allocation2 + $0x38] sm:$0xff]
    %v179 = vld [vmem:[#allocation2 + $0x40] sm:$0xff]
    %v180 = vld [vmem:[#allocation2 + $0x48] sm:$0xff]
    %v181 = vld [vmem:[#allocation2 + $0x50] sm:$0xff]
    %v182 = vld [vmem:[#allocation2 + $0x58] sm:$0xff]
    %v183 = vld [vmem:[#allocation2 + $0x60] sm:$0xff]
    %v184 = vld [vmem:[#allocation2 + $0x68] sm:$0xff]
    %v185 = vld [vmem:[#allocation2 + $0x70] sm:$0xff]
    %v186 = vld [vmem:[#allocation2 + $0x78] sm:$0xff]
    %v187 = vld [vmem:[#allocation2 + $0x80] sm:$0xff]
    %v188 = vld [vmem:[#allocation2 + $0x88] sm:$0xff]
    %v189 = vld [vmem:[#allocation2 + $0x90] sm:$0xff]
    %v190 = vld [vmem:[#allocation2 + $0x98] sm:$0xff]
    %v191 = vld [vmem:[#allocation2 + $0xa0] sm:$0xff]
    %v192 = vld [vmem:[#allocation2 + $0xa8] sm:$0xff]
    %v193 = vld [vmem:[#allocation2 + $0xb0] sm:$0xff]
    %v194 = vld [vmem:[#allocation2 + $0xb8] sm:$0xff]
    %v195 = vld [vmem:[#allocation2 + $0xc0] sm:$0xff]
    %v196 = vld [vmem:[#allocation2 + $0xc8] sm:$0xff]
    %v197 = vld [vmem:[#allocation2 + $0xd0] sm:$0xff]
    %v198 = vld [vmem:[#allocation2 + $0xd8] sm:$0xff]
    %v199 = vld [vmem:[#allocation2 + $0xe0] sm:$0xff]
    %v200 = vld [vmem:[#allocation2 + $0xe8] sm:$0xff]
    %v201 = vld [vmem:[#allocation2 + $0xf0] sm:$0xff]
    %v202 = vld [vmem:[#allocation2 + $0xf8] sm:$0xff]
    %v203 = vld [vmem:[#allocation2 + $0x100] sm:$0xff]
    %v204 = vld [vmem:[#allocation2 + $0x108] sm:$0xff]
    %v205 = vld [vmem:[#allocation2 + $0x110] sm:$0xff]
    %v206 = vld [vmem:[#allocation2 + $0x118] sm:$0xff]
    %v207 = vld [vmem:[#allocation2 + $0x120] sm:$0xff]
    %v208 = vld [vmem:[#allocation2 + $0x128] sm:$0xff]
    %v209 = vld [vmem:[#allocation2 + $0x130] sm:$0xff]
    %v210 = vld [vmem:[#allocation2 + $0x138] sm:$0xff]
    %v211 = vld [vmem:[#allocation2 + $0x140] sm:$0xff]
    %v212 = vld [vmem:[#allocation2 + $0x148] sm:$0xff]
    %v213 = vld [vmem:[#allocation2 + $0x150] sm:$0xff]
    %v214 = vld [vmem:[#allocation2 + $0x158] sm:$0xff]
    %v215 = vld [vmem:[#allocation2 + $0x160] sm:$0xff]
    %v216 = vld [vmem:[#allocation2 + $0x168] sm:$0xff]
    %v217 = vld [vmem:[#allocation2 + $0x170] sm:$0xff]
    %v218 = vld [vmem:[#allocation2 + $0x178] sm:$0xff]
    %v219 = vld [vmem:[#allocation2 + $0x180] sm:$0xff]
    %v220 = vld [vmem:[#allocation2 + $0x188] sm:$0xff]
    %v221 = vld [vmem:[#allocation2 + $0x190] sm:$0xff]
    %v222 = vld [vmem:[#allocation2 + $0x198] sm:$0xff]
    %v223 = vld [vmem:[#allocation2 + $0x1a0] sm:$0xff]
    %v224 = vld [vmem:[#allocation2 + $0x1a8] sm:$0xff]
    %v225 = vld [vmem:[#allocation2 + $0x1b0] sm:$0xff]
    %v226 = vld [vmem:[#allocation2 + $0x1b8] sm:$0xff]
    %v227 = vld [vmem:[#allocation2 + $0x1c0] sm:$0xff]
    %v228 = vld [vmem:[#allocation2 + $0x1c8] sm:$0xff]
    %v229 = vld [vmem:[#allocation2 + $0x1d0] sm:$0xff]
    %v230 = vld [vmem:[#allocation2 + $0x1d8] sm:$0xff]
    %v231 = vld [vmem:[#allocation2 + $0x1e0] sm:$0xff]
    %v232 = vld [vmem:[#allocation2 + $0x1e8] sm:$0xff]
    %v233 = vld [vmem:[#allocation2 + $0x1f0] sm:$0xff]
    %v234 = vld [vmem:[#allocation2 + $0x1f8] sm:$0xff]
    %v235 = vld [vmem:[#allocation2 + $0x200] sm:$0xff]
    %v236 = vld [vmem:[#allocation2 + $0x208] sm:$0xff]
    %v237 = vld [vmem:[#allocation2 + $0x210] sm:$0xff]
    %v238 = vld [vmem:[#allocation2 + $0x218] sm:$0xff]
    %v239 = vld [vmem:[#allocation2 + $0x220] sm:$0xff]
    %v240 = vld [vmem:[#allocation2 + $0x228] sm:$0xff]
    %v241 = vld [vmem:[#allocation2 + $0x230] sm:$0xff]
    %v242 = vld [vmem:[#allocation2 + $0x238] sm:$0xff]
    %v243 = vld [vmem:[#allocation2 + $0x240] sm:$0xff]
    %v244 = vld [vmem:[#allocation2 + $0x248] sm:$0xff]
    %v245 = vld [vmem:[#allocation2 + $0x250] sm:$0xff]
    %v246 = vld [vmem:[#allocation2 + $0x258] sm:$0xff]
    %v247 = vld [vmem:[#allocation2 + $0x260] sm:$0xff]
    %v248 = vld [vmem:[#allocation2 + $0x268] sm:$0xff]
    %v249 = vld [vmem:[#allocation2 + $0x270] sm:$0xff]
    %v250 = vld [vmem:[#allocation2 + $0x278] sm:$0xff]
    %v251 = vld [vmem:[#allocation2 + $0x280] sm:$0xff]
    %v252 = vld [vmem:[#allocation2 + $0x288] sm:$0xff]
    %v253 = vld [vmem:[#allocation2 + $0x290] sm:$0xff]
    %v254 = vld [vmem:[#allocation2 + $0x298] sm:$0xff]
    %v255 = vld [vmem:[#allocation2 + $0x2a0] sm:$0xff]
    %v256 = vld [vmem:[#allocation2 + $0x2a8] sm:$0xff]
    %v257 = vld [vmem:[#allocation2 + $0x2b0] sm:$0xff]
    %v258 = vld [vmem:[#allocation2 + $0x2b8] sm:$0xff]
    %v259 = vld [vmem:[#allocation2 + $0x2c0] sm:$0xff]
    %v260 = vld [vmem:[#allocation2 + $0x2c8] sm:$0xff]
    %v261 = vld [vmem:[#allocation2 + $0x2d0] sm:$0xff]
    %v262 = vld [vmem:[#allocation2 + $0x2d8] sm:$0xff]
    %v263 = vld [vmem:[#allocation2 + $0x2e0] sm:$0xff]
    %v264 = vld [vmem:[#allocation2 + $0x2e8] sm:$0xff]
    %v265 = vld [vmem:[#allocation2 + $0x2f0] sm:$0xff]
    %v266 = vld [vmem:[#allocation2 + $0x2f8] sm:$0xff]
    %v267 = vld [vmem:[#allocation2 + $0x300] sm:$0xff]
    %v268 = vld [vmem:[#allocation2 + $0x308] sm:$0xff]
    %v269 = vld [vmem:[#allocation2 + $0x310] sm:$0xff]
    %v270 = vld [vmem:[#allocation2 + $0x318] sm:$0xff]
    %v271 = vld [vmem:[#allocation2 + $0x320] sm:$0xff]
    %v272 = vld [vmem:[#allocation2 + $0x328] sm:$0xff]
    %v273 = vld [vmem:[#allocation2 + $0x330] sm:$0xff]
    %v274 = vld [vmem:[#allocation2 + $0x338] sm:$0xff]
    %v275 = vld [vmem:[#allocation2 + $0x340] sm:$0xff]
    %v276 = vld [vmem:[#allocation2 + $0x348] sm:$0xff]
    %v277 = vld [vmem:[#allocation2 + $0x350] sm:$0xff]
    %v278 = vld [vmem:[#allocation2 + $0x358] sm:$0xff]
    %v279 = vld [vmem:[#allocation2 + $0x360] sm:$0xff]
    %v280 = vld [vmem:[#allocation2 + $0x368] sm:$0xff]
    %v281 = vld [vmem:[#allocation2 + $0x370] sm:$0xff]
    %v282 = vld [vmem:[#allocation2 + $0x378] sm:$0xff]
    %v283 = vld [vmem:[#allocation2 + $0x380] sm:$0xff]
    %v284 = vld [vmem:[#allocation2 + $0x388] sm:$0xff]
    %v285 = vld [vmem:[#allocation2 + $0x390] sm:$0xff]
    %v286 = vld [vmem:[#allocation2 + $0x398] sm:$0xff]
    %v287 = vld [vmem:[#allocation2 + $0x3a0] sm:$0xff]
    %v288 = vld [vmem:[#allocation2 + $0x3a8] sm:$0xff]
    %v289 = vld [vmem:[#allocation2 + $0x3b0] sm:$0xff]
    %v290 = vld [vmem:[#allocation2 + $0x3b8] sm:$0xff]
    %v291 = vld [vmem:[#allocation2 + $0x3c0] sm:$0xff]
    %v292 = vld [vmem:[#allocation2 + $0x3c8] sm:$0xff]
    %v293 = vld [vmem:[#allocation2 + $0x3d0] sm:$0xff]
    %v294 = vld [vmem:[#allocation2 + $0x3d8] sm:$0xff]
    %v295 = vld [vmem:[#allocation2 + $0x3e0] sm:$0xff]
    %v296 = vld [vmem:[#allocation2 + $0x3e8] sm:$0xff]
    %v297 = vld [vmem:[#allocation2 + $0x3f0] sm:$0xff]
    %v298 = vld [vmem:[#allocation2 + $0x3f8] sm:$0xff]
    %v299 = vld [vmem:[%s2] sm:$0x3]
    %v301 = vlaneseq
    %v302 = vshrl.u32 %v301, 7
    %v303 = vsub.s32 0, %v302
    %v304 = vrot.slane %v299, %v303
    %v305 = vlaneseq
    %v306 = vshrl.u32 %v305, 7
    %v307 = vsub.s32 1, %v306
    %v308 = vrot.slane %v299, %v307
    %v439 = vunpack.c.l.b16 %v171
    %v440 = vunpack.c.h.b16 %v171
    %v441 = vunpack.c.l.b16 %v172
    %v442 = vunpack.c.h.b16 %v172
    %v443 = vunpack.c.l.b16 %v173
    %v444 = vunpack.c.h.b16 %v173
    %v445 = vunpack.c.l.b16 %v174
    %v446 = vunpack.c.h.b16 %v174
    %v447 = vunpack.c.l.b16 %v175
    %v448 = vunpack.c.h.b16 %v175
    %v449 = vunpack.c.l.b16 %v176
    %v450 = vunpack.c.h.b16 %v176
    %v451 = vunpack.c.l.b16 %v177
    %v452 = vunpack.c.h.b16 %v177
    %v453 = vunpack.c.l.b16 %v178
    %v454 = vunpack.c.h.b16 %v178
    %v455 = vunpack.c.l.b16 %v179
    %v456 = vunpack.c.h.b16 %v179
    %v457 = vunpack.c.l.b16 %v180
    %v458 = vunpack.c.h.b16 %v180
    %v459 = vunpack.c.l.b16 %v181
    %v460 = vunpack.c.h.b16 %v181
    %v461 = vunpack.c.l.b16 %v182
    %v462 = vunpack.c.h.b16 %v182
    %v463 = vunpack.c.l.b16 %v183
    %v464 = vunpack.c.h.b16 %v183
    %v465 = vunpack.c.l.b16 %v184
    %v466 = vunpack.c.h.b16 %v184
    %v467 = vunpack.c.l.b16 %v185
    %v468 = vunpack.c.h.b16 %v185
    %v469 = vunpack.c.l.b16 %v186
    %v470 = vunpack.c.h.b16 %v186
    %v471 = vunpack.c.l.b16 %v187
    %v472 = vunpack.c.h.b16 %v187
    %v473 = vunpack.c.l.b16 %v188
    %v474 = vunpack.c.h.b16 %v188
    %v475 = vunpack.c.l.b16 %v189
    %v476 = vunpack.c.h.b16 %v189
    %v477 = vunpack.c.l.b16 %v190
    %v478 = vunpack.c.h.b16 %v190
    %v479 = vunpack.c.l.b16 %v191
    %v480 = vunpack.c.h.b16 %v191
    %v481 = vunpack.c.l.b16 %v192
    %v482 = vunpack.c.h.b16 %v192
    %v483 = vunpack.c.l.b16 %v193
    %v484 = vunpack.c.h.b16 %v193
    %v485 = vunpack.c.l.b16 %v194
    %v486 = vunpack.c.h.b16 %v194
    %v487 = vunpack.c.l.b16 %v195
    %v488 = vunpack.c.h.b16 %v195
    %v489 = vunpack.c.l.b16 %v196
    %v490 = vunpack.c.h.b16 %v196
    %v491 = vunpack.c.l.b16 %v197
    %v492 = vunpack.c.h.b16 %v197
    %v493 = vunpack.c.l.b16 %v198
    %v494 = vunpack.c.h.b16 %v198
    %v495 = vunpack.c.l.b16 %v199
    %v496 = vunpack.c.h.b16 %v199
    %v497 = vunpack.c.l.b16 %v200
    %v498 = vunpack.c.h.b16 %v200
    %v499 = vunpack.c.l.b16 %v201
    %v500 = vunpack.c.h.b16 %v201
    %v501 = vunpack.c.l.b16 %v202
    %v502 = vunpack.c.h.b16 %v202
    %v503 = vunpack.c.l.b16 %v203
    %v504 = vunpack.c.h.b16 %v203
    %v505 = vunpack.c.l.b16 %v204
    %v506 = vunpack.c.h.b16 %v204
    %v507 = vunpack.c.l.b16 %v205
    %v508 = vunpack.c.h.b16 %v205
    %v509 = vunpack.c.l.b16 %v206
    %v510 = vunpack.c.h.b16 %v206
    %v511 = vunpack.c.l.b16 %v207
    %v512 = vunpack.c.h.b16 %v207
    %v513 = vunpack.c.l.b16 %v208
    %v514 = vunpack.c.h.b16 %v208
    %v515 = vunpack.c.l.b16 %v209
    %v516 = vunpack.c.h.b16 %v209
    %v517 = vunpack.c.l.b16 %v210
    %v518 = vunpack.c.h.b16 %v210
    %v519 = vunpack.c.l.b16 %v211
    %v520 = vunpack.c.h.b16 %v211
    %v521 = vunpack.c.l.b16 %v212
    %v522 = vunpack.c.h.b16 %v212
    %v523 = vunpack.c.l.b16 %v213
    %v524 = vunpack.c.h.b16 %v213
    %v525 = vunpack.c.l.b16 %v214
    %v526 = vunpack.c.h.b16 %v214
    %v527 = vunpack.c.l.b16 %v215
    %v528 = vunpack.c.h.b16 %v215
    %v529 = vunpack.c.l.b16 %v216
    %v530 = vunpack.c.h.b16 %v216
    %v531 = vunpack.c.l.b16 %v217
    %v532 = vunpack.c.h.b16 %v217
    %v533 = vunpack.c.l.b16 %v218
    %v534 = vunpack.c.h.b16 %v218
    %v535 = vunpack.c.l.b16 %v219
    %v536 = vunpack.c.h.b16 %v219
    %v537 = vunpack.c.l.b16 %v220
    %v538 = vunpack.c.h.b16 %v220
    %v539 = vunpack.c.l.b16 %v221
    %v540 = vunpack.c.h.b16 %v221
    %v541 = vunpack.c.l.b16 %v222
    %v542 = vunpack.c.h.b16 %v222
    %v543 = vunpack.c.l.b16 %v223
    %v544 = vunpack.c.h.b16 %v223
    %v545 = vunpack.c.l.b16 %v224
    %v546 = vunpack.c.h.b16 %v224
    %v547 = vunpack.c.l.b16 %v225
    %v548 = vunpack.c.h.b16 %v225
    %v549 = vunpack.c.l.b16 %v226
    %v550 = vunpack.c.h.b16 %v226
    %v551 = vunpack.c.l.b16 %v227
    %v552 = vunpack.c.h.b16 %v227
    %v553 = vunpack.c.l.b16 %v228
    %v554 = vunpack.c.h.b16 %v228
    %v555 = vunpack.c.l.b16 %v229
    %v556 = vunpack.c.h.b16 %v229
    %v557 = vunpack.c.l.b16 %v230
    %v558 = vunpack.c.h.b16 %v230
    %v559 = vunpack.c.l.b16 %v231
    %v560 = vunpack.c.h.b16 %v231
    %v561 = vunpack.c.l.b16 %v232
    %v562 = vunpack.c.h.b16 %v232
    %v563 = vunpack.c.l.b16 %v233
    %v564 = vunpack.c.h.b16 %v233
    %v565 = vunpack.c.l.b16 %v234
    %v566 = vunpack.c.h.b16 %v234
    %v567 = vunpack.c.l.b16 %v235
    %v568 = vunpack.c.h.b16 %v235
    %v569 = vunpack.c.l.b16 %v236
    %v570 = vunpack.c.h.b16 %v236
    %v571 = vunpack.c.l.b16 %v237
    %v572 = vunpack.c.h.b16 %v237
    %v573 = vunpack.c.l.b16 %v238
    %v574 = vunpack.c.h.b16 %v238
    %v575 = vunpack.c.l.b16 %v239
    %v576 = vunpack.c.h.b16 %v239
    %v577 = vunpack.c.l.b16 %v240
    %v578 = vunpack.c.h.b16 %v240
    %v579 = vunpack.c.l.b16 %v241
    %v580 = vunpack.c.h.b16 %v241
    %v581 = vunpack.c.l.b16 %v242
    %v582 = vunpack.c.h.b16 %v242
    %v583 = vunpack.c.l.b16 %v243
    %v584 = vunpack.c.h.b16 %v243
    %v585 = vunpack.c.l.b16 %v244
    %v586 = vunpack.c.h.b16 %v244
    %v587 = vunpack.c.l.b16 %v245
    %v588 = vunpack.c.h.b16 %v245
    %v589 = vunpack.c.l.b16 %v246
    %v590 = vunpack.c.h.b16 %v246
    %v591 = vunpack.c.l.b16 %v247
    %v592 = vunpack.c.h.b16 %v247
    %v593 = vunpack.c.l.b16 %v248
    %v594 = vunpack.c.h.b16 %v248
    %v595 = vunpack.c.l.b16 %v249
    %v596 = vunpack.c.h.b16 %v249
    %v597 = vunpack.c.l.b16 %v250
    %v598 = vunpack.c.h.b16 %v250
    %v599 = vunpack.c.l.b16 %v251
    %v600 = vunpack.c.h.b16 %v251
    %v601 = vunpack.c.l.b16 %v252
    %v602 = vunpack.c.h.b16 %v252
    %v603 = vunpack.c.l.b16 %v253
    %v604 = vunpack.c.h.b16 %v253
    %v605 = vunpack.c.l.b16 %v254
    %v606 = vunpack.c.h.b16 %v254
    %v607 = vunpack.c.l.b16 %v255
    %v608 = vunpack.c.h.b16 %v255
    %v609 = vunpack.c.l.b16 %v256
    %v610 = vunpack.c.h.b16 %v256
    %v611 = vunpack.c.l.b16 %v257
    %v612 = vunpack.c.h.b16 %v257
    %v613 = vunpack.c.l.b16 %v258
    %v614 = vunpack.c.h.b16 %v258
    %v615 = vunpack.c.l.b16 %v259
    %v616 = vunpack.c.h.b16 %v259
    %v617 = vunpack.c.l.b16 %v260
    %v618 = vunpack.c.h.b16 %v260
    %v619 = vunpack.c.l.b16 %v261
    %v620 = vunpack.c.h.b16 %v261
    %v621 = vunpack.c.l.b16 %v262
    %v622 = vunpack.c.h.b16 %v262
    %v623 = vunpack.c.l.b16 %v263
    %v624 = vunpack.c.h.b16 %v263
    %v625 = vunpack.c.l.b16 %v264
    %v626 = vunpack.c.h.b16 %v264
    %v627 = vunpack.c.l.b16 %v265
    %v628 = vunpack.c.h.b16 %v265
    %v629 = vunpack.c.l.b16 %v266
    %v630 = vunpack.c.h.b16 %v266
    %v631 = vunpack.c.l.b16 %v267
    %v632 = vunpack.c.h.b16 %v267
    %v633 = vunpack.c.l.b16 %v268
    %v634 = vunpack.c.h.b16 %v268
    %v635 = vunpack.c.l.b16 %v269
    %v636 = vunpack.c.h.b16 %v269
    %v637 = vunpack.c.l.b16 %v270
    %v638 = vunpack.c.h.b16 %v270
    %v639 = vunpack.c.l.b16 %v271
    %v640 = vunpack.c.h.b16 %v271
    %v641 = vunpack.c.l.b16 %v272
    %v642 = vunpack.c.h.b16 %v272
    %v643 = vunpack.c.l.b16 %v273
    %v644 = vunpack.c.h.b16 %v273
    %v645 = vunpack.c.l.b16 %v274
    %v646 = vunpack.c.h.b16 %v274
    %v647 = vunpack.c.l.b16 %v275
    %v648 = vunpack.c.h.b16 %v275
    %v649 = vunpack.c.l.b16 %v276
    %v650 = vunpack.c.h.b16 %v276
    %v651 = vunpack.c.l.b16 %v277
    %v652 = vunpack.c.h.b16 %v277
    %v653 = vunpack.c.l.b16 %v278
    %v654 = vunpack.c.h.b16 %v278
    %v655 = vunpack.c.l.b16 %v279
    %v656 = vunpack.c.h.b16 %v279
    %v657 = vunpack.c.l.b16 %v280
    %v658 = vunpack.c.h.b16 %v280
    %v659 = vunpack.c.l.b16 %v281
    %v660 = vunpack.c.h.b16 %v281
    %v661 = vunpack.c.l.b16 %v282
    %v662 = vunpack.c.h.b16 %v282
    %v663 = vunpack.c.l.b16 %v283
    %v664 = vunpack.c.h.b16 %v283
    %v665 = vunpack.c.l.b16 %v284
    %v666 = vunpack.c.h.b16 %v284
    %v667 = vunpack.c.l.b16 %v285
    %v668 = vunpack.c.h.b16 %v285
    %v669 = vunpack.c.l.b16 %v286
    %v670 = vunpack.c.h.b16 %v286
    %v671 = vunpack.c.l.b16 %v287
    %v672 = vunpack.c.h.b16 %v287
    %v673 = vunpack.c.l.b16 %v288
    %v674 = vunpack.c.h.b16 %v288
    %v675 = vunpack.c.l.b16 %v289
    %v676 = vunpack.c.h.b16 %v289
    %v677 = vunpack.c.l.b16 %v290
    %v678 = vunpack.c.h.b16 %v290
    %v679 = vunpack.c.l.b16 %v291
    %v680 = vunpack.c.h.b16 %v291
    %v681 = vunpack.c.l.b16 %v292
    %v682 = vunpack.c.h.b16 %v292
    %v683 = vunpack.c.l.b16 %v293
    %v684 = vunpack.c.h.b16 %v293
    %v685 = vunpack.c.l.b16 %v294
    %v686 = vunpack.c.h.b16 %v294
    %v687 = vunpack.c.l.b16 %v295
    %v688 = vunpack.c.h.b16 %v295
    %v689 = vunpack.c.l.b16 %v296
    %v690 = vunpack.c.h.b16 %v296
    %v691 = vunpack.c.l.b16 %v297
    %v692 = vunpack.c.h.b16 %v297
    %v693 = vunpack.c.l.b16 %v298
    %v694 = vunpack.c.h.b16 %v298
    %v695 = vpack.c.b16 %v441, %v439
    %v696 = vpack.c.b16 %v442, %v440
    %v697 = vpack.c.b16 %v445, %v443
    %v698 = vpack.c.b16 %v446, %v444
    %v699 = vpack.c.b16 %v449, %v447
    %v700 = vpack.c.b16 %v450, %v448
    %v701 = vpack.c.b16 %v453, %v451
    %v702 = vpack.c.b16 %v454, %v452
    %v703 = vpack.c.b16 %v457, %v455
    %v704 = vpack.c.b16 %v458, %v456
    %v705 = vpack.c.b16 %v461, %v459
    %v706 = vpack.c.b16 %v462, %v460
    %v707 = vpack.c.b16 %v465, %v463
    %v708 = vpack.c.b16 %v466, %v464
    %v709 = vpack.c.b16 %v469, %v467
    %v710 = vpack.c.b16 %v470, %v468
    %v711 = vpack.c.b16 %v473, %v471
    %v712 = vpack.c.b16 %v474, %v472
    %v713 = vpack.c.b16 %v477, %v475
    %v714 = vpack.c.b16 %v478, %v476
    %v715 = vpack.c.b16 %v481, %v479
    %v716 = vpack.c.b16 %v482, %v480
    %v717 = vpack.c.b16 %v485, %v483
    %v718 = vpack.c.b16 %v486, %v484
    %v719 = vpack.c.b16 %v489, %v487
    %v720 = vpack.c.b16 %v490, %v488
    %v721 = vpack.c.b16 %v493, %v491
    %v722 = vpack.c.b16 %v494, %v492
    %v723 = vpack.c.b16 %v497, %v495
    %v724 = vpack.c.b16 %v498, %v496
    %v725 = vpack.c.b16 %v501, %v499
    %v726 = vpack.c.b16 %v502, %v500
    %v727 = vpack.c.b16 %v505, %v503
    %v728 = vpack.c.b16 %v506, %v504
    %v729 = vpack.c.b16 %v509, %v507
    %v730 = vpack.c.b16 %v510, %v508
    %v731 = vpack.c.b16 %v513, %v511
    %v732 = vpack.c.b16 %v514, %v512
    %v733 = vpack.c.b16 %v517, %v515
    %v734 = vpack.c.b16 %v518, %v516
    %v735 = vpack.c.b16 %v521, %v519
    %v736 = vpack.c.b16 %v522, %v520
    %v737 = vpack.c.b16 %v525, %v523
    %v738 = vpack.c.b16 %v526, %v524
    %v739 = vpack.c.b16 %v529, %v527
    %v740 = vpack.c.b16 %v530, %v528
    %v741 = vpack.c.b16 %v533, %v531
    %v742 = vpack.c.b16 %v534, %v532
    %v743 = vpack.c.b16 %v537, %v535
    %v744 = vpack.c.b16 %v538, %v536
    %v745 = vpack.c.b16 %v541, %v539
    %v746 = vpack.c.b16 %v542, %v540
    %v747 = vpack.c.b16 %v545, %v543
    %v748 = vpack.c.b16 %v546, %v544
    %v749 = vpack.c.b16 %v549, %v547
    %v750 = vpack.c.b16 %v550, %v548
    %v751 = vpack.c.b16 %v553, %v551
    %v752 = vpack.c.b16 %v554, %v552
    %v753 = vpack.c.b16 %v557, %v555
    %v754 = vpack.c.b16 %v558, %v556
    %v755 = vpack.c.b16 %v561, %v559
    %v756 = vpack.c.b16 %v562, %v560
    %v757 = vpack.c.b16 %v565, %v563
    %v758 = vpack.c.b16 %v566, %v564
    %v759 = vpack.c.b16 %v569, %v567
    %v760 = vpack.c.b16 %v570, %v568
    %v761 = vpack.c.b16 %v573, %v571
    %v762 = vpack.c.b16 %v574, %v572
    %v763 = vpack.c.b16 %v577, %v575
    %v764 = vpack.c.b16 %v578, %v576
    %v765 = vpack.c.b16 %v581, %v579
    %v766 = vpack.c.b16 %v582, %v580
    %v767 = vpack.c.b16 %v585, %v583
    %v768 = vpack.c.b16 %v586, %v584
    %v769 = vpack.c.b16 %v589, %v587
    %v770 = vpack.c.b16 %v590, %v588
    %v771 = vpack.c.b16 %v593, %v591
    %v772 = vpack.c.b16 %v594, %v592
    %v773 = vpack.c.b16 %v597, %v595
    %v774 = vpack.c.b16 %v598, %v596
    %v775 = vpack.c.b16 %v601, %v599
    %v776 = vpack.c.b16 %v602, %v600
    %v777 = vpack.c.b16 %v605, %v603
    %v778 = vpack.c.b16 %v606, %v604
    %v779 = vpack.c.b16 %v609, %v607
    %v780 = vpack.c.b16 %v610, %v608
    %v781 = vpack.c.b16 %v613, %v611
    %v782 = vpack.c.b16 %v614, %v612
    %v783 = vpack.c.b16 %v617, %v615
    %v784 = vpack.c.b16 %v618, %v616
    %v785 = vpack.c.b16 %v621, %v619
    %v786 = vpack.c.b16 %v622, %v620
    %v787 = vpack.c.b16 %v625, %v623
    %v788 = vpack.c.b16 %v626, %v624
    %v789 = vpack.c.b16 %v629, %v627
    %v790 = vpack.c.b16 %v630, %v628
    %v791 = vpack.c.b16 %v633, %v631
    %v792 = vpack.c.b16 %v634, %v632
    %v793 = vpack.c.b16 %v637, %v635
    %v794 = vpack.c.b16 %v638, %v636
    %v795 = vpack.c.b16 %v641, %v639
    %v796 = vpack.c.b16 %v642, %v640
    %v797 = vpack.c.b16 %v645, %v643
    %v798 = vpack.c.b16 %v646, %v644
    %v799 = vpack.c.b16 %v649, %v647
    %v800 = vpack.c.b16 %v650, %v648
    %v801 = vpack.c.b16 %v653, %v651
    %v802 = vpack.c.b16 %v654, %v652
    %v803 = vpack.c.b16 %v657, %v655
    %v804 = vpack.c.b16 %v658, %v656
    %v805 = vpack.c.b16 %v661, %v659
    %v806 = vpack.c.b16 %v662, %v660
    %v807 = vpack.c.b16 %v665, %v663
    %v808 = vpack.c.b16 %v666, %v664
    %v809 = vpack.c.b16 %v669, %v667
    %v810 = vpack.c.b16 %v670, %v668
    %v811 = vpack.c.b16 %v673, %v671
    %v812 = vpack.c.b16 %v674, %v672
    %v813 = vpack.c.b16 %v677, %v675
    %v814 = vpack.c.b16 %v678, %v676
    %v815 = vpack.c.b16 %v681, %v679
    %v816 = vpack.c.b16 %v682, %v680
    %v817 = vpack.c.b16 %v685, %v683
    %v818 = vpack.c.b16 %v686, %v684
    %v819 = vpack.c.b16 %v689, %v687
    %v820 = vpack.c.b16 %v690, %v688
    %v821 = vpack.c.b16 %v693, %v691
    %v822 = vpack.c.b16 %v694, %v692
    %951 = vmatprep.subr.bf16.mxu0 %v710
    %952 = vmatpush1.bf16.msra.mxu0 %v709
    %953 = vmatprep.subr.bf16.mxu0 %v708
    %954 = vmatpush1.bf16.msra.mxu0 %v707
    %955 = vmatprep.subr.bf16.mxu0 %v706
    %956 = vmatpush1.bf16.msra.mxu0 %v705
    %957 = vmatprep.subr.bf16.mxu0 %v704
    %958 = vmatpush1.bf16.msra.mxu0 %v703
    %959 = vmatprep.subr.bf16.mxu0 %v702
    %960 = vmatpush1.bf16.msra.mxu0 %v701
    %961 = vmatprep.subr.bf16.mxu0 %v700
    %962 = vmatpush1.bf16.msra.mxu0 %v699
    %963 = vmatprep.subr.bf16.mxu0 %v698
    %964 = vmatpush1.bf16.msra.mxu0 %v697
    %965 = vmatprep.subr.bf16.mxu0 %v696
    %966 = vmatpush1.bf16.msra.mxu0 %v695
    %967 = vmatprep.subr.bf16.mxu0 %v726
    %968 = vmatpush2.bf16.msra.mxu0 %v725
    %969 = vmatprep.subr.bf16.mxu0 %v724
    %970 = vmatpush2.bf16.msra.mxu0 %v723
    %971 = vmatprep.subr.bf16.mxu0 %v722
    %972 = vmatpush2.bf16.msra.mxu0 %v721
    %973 = vmatprep.subr.bf16.mxu0 %v720
    %974 = vmatpush2.bf16.msra.mxu0 %v719
    %975 = vmatprep.subr.bf16.mxu0 %v718
    %976 = vmatpush2.bf16.msra.mxu0 %v717
    %977 = vmatprep.subr.bf16.mxu0 %v716
    %978 = vmatpush2.bf16.msra.mxu0 %v715
    %979 = vmatprep.subr.bf16.mxu0 %v714
    %980 = vmatpush2.bf16.msra.mxu0 %v713
    %981 = vmatprep.subr.bf16.mxu0 %v712
    %982 = vmatpush2.bf16.msra.mxu0 %v711
    %983 = vmatprep.mubr.bf16.mxu0 %v164
    %984 = vmatmul.mubr.bf16.gmra.mxu0 %v163
    %v985 = vpop.f32.mrf.mxu0
    %v986 = vadd.f32 %v304, %v985
    %v987 = vpop.f32.mrf.mxu0
    %v988 = vadd.f32 %v308, %v987
    %v989 = vpop.f32.mrf.mxu0
    %v990 = vpop.f32.mrf.mxu0
    %991 = vdwg.mxu0
    %992 = vmatprep.subr.bf16.mxu0 %v742
    %993 = vmatpush1.bf16.msra.mxu0 %v741
    %994 = vmatprep.subr.bf16.mxu0 %v740
    %995 = vmatpush1.bf16.msra.mxu0 %v739
    %996 = vmatprep.subr.bf16.mxu0 %v738
    %997 = vmatpush1.bf16.msra.mxu0 %v737
    %998 = vmatprep.subr.bf16.mxu0 %v736
    %999 = vmatpush1.bf16.msra.mxu0 %v735
    %1000 = vmatprep.subr.bf16.mxu0 %v734
    %1001 = vmatpush1.bf16.msra.mxu0 %v733
    %1002 = vmatprep.subr.bf16.mxu0 %v732
    %1003 = vmatpush1.bf16.msra.mxu0 %v731
    %1004 = vmatprep.subr.bf16.mxu0 %v730
    %1005 = vmatpush1.bf16.msra.mxu0 %v729
    %1006 = vmatprep.subr.bf16.mxu0 %v728
    %1007 = vmatpush1.bf16.msra.mxu0 %v727
    %1008 = vmatprep.subr.bf16.mxu0 %v758
    %1009 = vmatpush2.bf16.msra.mxu0 %v757
    %1010 = vmatprep.subr.bf16.mxu0 %v756
    %1011 = vmatpush2.bf16.msra.mxu0 %v755
    %1012 = vmatprep.subr.bf16.mxu0 %v754
    %1013 = vmatpush2.bf16.msra.mxu0 %v753
    %1014 = vmatprep.subr.bf16.mxu0 %v752
    %1015 = vmatpush2.bf16.msra.mxu0 %v751
    %1016 = vmatprep.subr.bf16.mxu0 %v750
    %1017 = vmatpush2.bf16.msra.mxu0 %v749
    %1018 = vmatprep.subr.bf16.mxu0 %v748
    %1019 = vmatpush2.bf16.msra.mxu0 %v747
    %1020 = vmatprep.subr.bf16.mxu0 %v746
    %1021 = vmatpush2.bf16.msra.mxu0 %v745
    %1022 = vmatprep.subr.bf16.mxu0 %v744
    %1023 = vmatpush2.bf16.msra.mxu0 %v743
    %1024 = vmatprep.mubr.bf16.mxu0 %v166
    %1025 = vmatmul.mubr.bf16.gmra.mxu0 %v165
    %v1026 = vpop.f32.mrf.mxu0
    %v1027 = vadd.f32 %v986, %v1026
    %v1028 = vpop.f32.mrf.mxu0
    %v1029 = vadd.f32 %v988, %v1028
    %v1030 = vpop.f32.mrf.mxu0
    %v1031 = vpop.f32.mrf.mxu0
    %1032 = vdwg.mxu0
    %1033 = vmatprep.subr.bf16.mxu0 %v774
    %1034 = vmatpush1.bf16.msra.mxu0 %v773
    %1035 = vmatprep.subr.bf16.mxu0 %v772
    %1036 = vmatpush1.bf16.msra.mxu0 %v771
    %1037 = vmatprep.subr.bf16.mxu0 %v770
    %1038 = vmatpush1.bf16.msra.mxu0 %v769
    %1039 = vmatprep.subr.bf16.mxu0 %v768
    %1040 = vmatpush1.bf16.msra.mxu0 %v767
    %1041 = vmatprep.subr.bf16.mxu0 %v766
    %1042 = vmatpush1.bf16.msra.mxu0 %v765
    %1043 = vmatprep.subr.bf16.mxu0 %v764
    %1044 = vmatpush1.bf16.msra.mxu0 %v763
    %1045 = vmatprep.subr.bf16.mxu0 %v762
    %1046 = vmatpush1.bf16.msra.mxu0 %v761
    %1047 = vmatprep.subr.bf16.mxu0 %v760
    %1048 = vmatpush1.bf16.msra.mxu0 %v759
    %1049 = vmatprep.subr.bf16.mxu0 %v790
    %1050 = vmatpush2.bf16.msra.mxu0 %v789
    %1051 = vmatprep.subr.bf16.mxu0 %v788
    %1052 = vmatpush2.bf16.msra.mxu0 %v787
    %1053 = vmatprep.subr.bf16.mxu0 %v786
    %1054 = vmatpush2.bf16.msra.mxu0 %v785
    %1055 = vmatprep.subr.bf16.mxu0 %v784
    %1056 = vmatpush2.bf16.msra.mxu0 %v783
    %1057 = vmatprep.subr.bf16.mxu0 %v782
    %1058 = vmatpush2.bf16.msra.mxu0 %v781
    %1059 = vmatprep.subr.bf16.mxu0 %v780
    %1060 = vmatpush2.bf16.msra.mxu0 %v779
    %1061 = vmatprep.subr.bf16.mxu0 %v778
    %1062 = vmatpush2.bf16.msra.mxu0 %v777
    %1063 = vmatprep.subr.bf16.mxu0 %v776
    %1064 = vmatpush2.bf16.msra.mxu0 %v775
    %1065 = vmatprep.mubr.bf16.mxu0 %v168
    %1066 = vmatmul.mubr.bf16.gmra.mxu0 %v167
    %v1067 = vpop.f32.mrf.mxu0
    %v1068 = vadd.f32 %v1027, %v1067
    %v1069 = vpop.f32.mrf.mxu0
    %v1070 = vadd.f32 %v1029, %v1069
    %v1071 = vpop.f32.mrf.mxu0
    %v1072 = vpop.f32.mrf.mxu0
    %1073 = vdwg.mxu0
    %1074 = vmatprep.subr.bf16.mxu0 %v806
    %1075 = vmatpush1.bf16.msra.mxu0 %v805
    %1076 = vmatprep.subr.bf16.mxu0 %v804
    %1077 = vmatpush1.bf16.msra.mxu0 %v803
    %1078 = vmatprep.subr.bf16.mxu0 %v802
    %1079 = vmatpush1.bf16.msra.mxu0 %v801
    %1080 = vmatprep.subr.bf16.mxu0 %v800
    %1081 = vmatpush1.bf16.msra.mxu0 %v799
    %1082 = vmatprep.subr.bf16.mxu0 %v798
    %1083 = vmatpush1.bf16.msra.mxu0 %v797
    %1084 = vmatprep.subr.bf16.mxu0 %v796
    %1085 = vmatpush1.bf16.msra.mxu0 %v795
    %1086 = vmatprep.subr.bf16.mxu0 %v794
    %1087 = vmatpush1.bf16.msra.mxu0 %v793
    %1088 = vmatprep.subr.bf16.mxu0 %v792
    %1089 = vmatpush1.bf16.msra.mxu0 %v791
    %1090 = vmatprep.subr.bf16.mxu0 %v822
    %1091 = vmatpush2.bf16.msra.mxu0 %v821
    %1092 = vmatprep.subr.bf16.mxu0 %v820
    %1093 = vmatpush2.bf16.msra.mxu0 %v819
    %1094 = vmatprep.subr.bf16.mxu0 %v818
    %1095 = vmatpush2.bf16.msra.mxu0 %v817
    %1096 = vmatprep.subr.bf16.mxu0 %v816
    %1097 = vmatpush2.bf16.msra.mxu0 %v815
    %1098 = vmatprep.subr.bf16.mxu0 %v814
    %1099 = vmatpush2.bf16.msra.mxu0 %v813
    %1100 = vmatprep.subr.bf16.mxu0 %v812
    %1101 = vmatpush2.bf16.msra.mxu0 %v811
    %1102 = vmatprep.subr.bf16.mxu0 %v810
    %1103 = vmatpush2.bf16.msra.mxu0 %v809
    %1104 = vmatprep.subr.bf16.mxu0 %v808
    %1105 = vmatpush2.bf16.msra.mxu0 %v807
    %1106 = vmatprep.mubr.bf16.mxu0 %v170
    %1107 = vmatmul.mubr.bf16.gmra.mxu0 %v169
    %v1108 = vpop.f32.mrf.mxu0
    %v1109 = vadd.f32 %v1068, %v1108
    %v1110 = vpop.f32.mrf.mxu0
    %v1111 = vadd.f32 %v1070, %v1110
    %v1112 = vpop.f32.mrf.mxu0
    %v1113 = vpop.f32.mrf.mxu0
    %1114 = vdwg.mxu0
    %v1115 = vpack.c.bf16 %v1109, %v1109
    %v1116 = vpack.c.bf16 %v1111, %v1111
    %v1117 = vld [vmem:[#allocation4] sm:$0xff]
    %v1118 = vld [vmem:[#allocation4 + $0x8] sm:$0xff]
    %v1119 = vld [vmem:[#allocation4 + $0x10] sm:$0xff]
    %v1120 = vld [vmem:[#allocation4 + $0x18] sm:$0xff]
    %v1121 = vld [vmem:[#allocation4 + $0x20] sm:$0xff]
    %v1122 = vld [vmem:[#allocation4 + $0x28] sm:$0xff]
    %v1123 = vld [vmem:[#allocation4 + $0x30] sm:$0xff]
    %v1124 = vld [vmem:[#allocation4 + $0x38] sm:$0xff]
    %v1125 = vld [vmem:[#allocation4 + $0x40] sm:$0xff]
    %v1126 = vld [vmem:[#allocation4 + $0x48] sm:$0xff]
    %v1127 = vld [vmem:[#allocation4 + $0x50] sm:$0xff]
    %v1128 = vld [vmem:[#allocation4 + $0x58] sm:$0xff]
    %v1129 = vld [vmem:[#allocation4 + $0x60] sm:$0xff]
    %v1130 = vld [vmem:[#allocation4 + $0x68] sm:$0xff]
    %v1131 = vld [vmem:[#allocation4 + $0x70] sm:$0xff]
    %v1132 = vld [vmem:[#allocation4 + $0x78] sm:$0xff]
    %v1133 = vld [vmem:[#allocation4 + $0x80] sm:$0xff]
    %v1134 = vld [vmem:[#allocation4 + $0x88] sm:$0xff]
    %v1135 = vld [vmem:[#allocation4 + $0x90] sm:$0xff]
    %v1136 = vld [vmem:[#allocation4 + $0x98] sm:$0xff]
    %v1137 = vld [vmem:[#allocation4 + $0xa0] sm:$0xff]
    %v1138 = vld [vmem:[#allocation4 + $0xa8] sm:$0xff]
    %v1139 = vld [vmem:[#allocation4 + $0xb0] sm:$0xff]
    %v1140 = vld [vmem:[#allocation4 + $0xb8] sm:$0xff]
    %v1141 = vld [vmem:[#allocation4 + $0xc0] sm:$0xff]
    %v1142 = vld [vmem:[#allocation4 + $0xc8] sm:$0xff]
    %v1143 = vld [vmem:[#allocation4 + $0xd0] sm:$0xff]
    %v1144 = vld [vmem:[#allocation4 + $0xd8] sm:$0xff]
    %v1145 = vld [vmem:[#allocation4 + $0xe0] sm:$0xff]
    %v1146 = vld [vmem:[#allocation4 + $0xe8] sm:$0xff]
    %v1147 = vld [vmem:[#allocation4 + $0xf0] sm:$0xff]
    %v1148 = vld [vmem:[#allocation4 + $0xf8] sm:$0xff]
    %v1149 = vld [vmem:[%s4] sm:$0x3]
    %v1151 = vlaneseq
    %v1152 = vshrl.u32 %v1151, 7
    %v1153 = vsub.s32 0, %v1152
    %v1154 = vrot.slane %v1149, %v1153
    %v1155 = vlaneseq
    %v1156 = vshrl.u32 %v1155, 7
    %v1157 = vsub.s32 1, %v1156
    %v1158 = vrot.slane %v1149, %v1157
    %v1193 = vunpack.c.l.b16 %v1117
    %v1194 = vunpack.c.h.b16 %v1117
    %v1195 = vunpack.c.l.b16 %v1118
    %v1196 = vunpack.c.h.b16 %v1118
    %v1197 = vunpack.c.l.b16 %v1119
    %v1198 = vunpack.c.h.b16 %v1119
    %v1199 = vunpack.c.l.b16 %v1120
    %v1200 = vunpack.c.h.b16 %v1120
    %v1201 = vunpack.c.l.b16 %v1121
    %v1202 = vunpack.c.h.b16 %v1121
    %v1203 = vunpack.c.l.b16 %v1122
    %v1204 = vunpack.c.h.b16 %v1122
    %v1205 = vunpack.c.l.b16 %v1123
    %v1206 = vunpack.c.h.b16 %v1123
    %v1207 = vunpack.c.l.b16 %v1124
    %v1208 = vunpack.c.h.b16 %v1124
    %v1209 = vunpack.c.l.b16 %v1125
    %v1210 = vunpack.c.h.b16 %v1125
    %v1211 = vunpack.c.l.b16 %v1126
    %v1212 = vunpack.c.h.b16 %v1126
    %v1213 = vunpack.c.l.b16 %v1127
    %v1214 = vunpack.c.h.b16 %v1127
    %v1215 = vunpack.c.l.b16 %v1128
    %v1216 = vunpack.c.h.b16 %v1128
    %v1217 = vunpack.c.l.b16 %v1129
    %v1218 = vunpack.c.h.b16 %v1129
    %v1219 = vunpack.c.l.b16 %v1130
    %v1220 = vunpack.c.h.b16 %v1130
    %v1221 = vunpack.c.l.b16 %v1131
    %v1222 = vunpack.c.h.b16 %v1131
    %v1223 = vunpack.c.l.b16 %v1132
    %v1224 = vunpack.c.h.b16 %v1132
    %v1225 = vunpack.c.l.b16 %v1133
    %v1226 = vunpack.c.h.b16 %v1133
    %v1227 = vunpack.c.l.b16 %v1134
    %v1228 = vunpack.c.h.b16 %v1134
    %v1229 = vunpack.c.l.b16 %v1135
    %v1230 = vunpack.c.h.b16 %v1135
    %v1231 = vunpack.c.l.b16 %v1136
    %v1232 = vunpack.c.h.b16 %v1136
    %v1233 = vunpack.c.l.b16 %v1137
    %v1234 = vunpack.c.h.b16 %v1137
    %v1235 = vunpack.c.l.b16 %v1138
    %v1236 = vunpack.c.h.b16 %v1138
    %v1237 = vunpack.c.l.b16 %v1139
    %v1238 = vunpack.c.h.b16 %v1139
    %v1239 = vunpack.c.l.b16 %v1140
    %v1240 = vunpack.c.h.b16 %v1140
    %v1241 = vunpack.c.l.b16 %v1141
    %v1242 = vunpack.c.h.b16 %v1141
    %v1243 = vunpack.c.l.b16 %v1142
    %v1244 = vunpack.c.h.b16 %v1142
    %v1245 = vunpack.c.l.b16 %v1143
    %v1246 = vunpack.c.h.b16 %v1143
    %v1247 = vunpack.c.l.b16 %v1144
    %v1248 = vunpack.c.h.b16 %v1144
    %v1249 = vunpack.c.l.b16 %v1145
    %v1250 = vunpack.c.h.b16 %v1145
    %v1251 = vunpack.c.l.b16 %v1146
    %v1252 = vunpack.c.h.b16 %v1146
    %v1253 = vunpack.c.l.b16 %v1147
    %v1254 = vunpack.c.h.b16 %v1147
    %v1255 = vunpack.c.l.b16 %v1148
    %v1256 = vunpack.c.h.b16 %v1148
    %v1257 = vpack.c.b16 %v1195, %v1193
    %v1258 = vpack.c.b16 %v1196, %v1194
    %v1259 = vpack.c.b16 %v1199, %v1197
    %v1260 = vpack.c.b16 %v1200, %v1198
    %v1261 = vpack.c.b16 %v1203, %v1201
    %v1262 = vpack.c.b16 %v1204, %v1202
    %v1263 = vpack.c.b16 %v1207, %v1205
    %v1264 = vpack.c.b16 %v1208, %v1206
    %v1265 = vpack.c.b16 %v1211, %v1209
    %v1266 = vpack.c.b16 %v1212, %v1210
    %v1267 = vpack.c.b16 %v1215, %v1213
    %v1268 = vpack.c.b16 %v1216, %v1214
    %v1269 = vpack.c.b16 %v1219, %v1217
    %v1270 = vpack.c.b16 %v1220, %v1218
    %v1271 = vpack.c.b16 %v1223, %v1221
    %v1272 = vpack.c.b16 %v1224, %v1222
    %v1273 = vpack.c.b16 %v1227, %v1225
    %v1274 = vpack.c.b16 %v1228, %v1226
    %v1275 = vpack.c.b16 %v1231, %v1229
    %v1276 = vpack.c.b16 %v1232, %v1230
    %v1277 = vpack.c.b16 %v1235, %v1233
    %v1278 = vpack.c.b16 %v1236, %v1234
    %v1279 = vpack.c.b16 %v1239, %v1237
    %v1280 = vpack.c.b16 %v1240, %v1238
    %v1281 = vpack.c.b16 %v1243, %v1241
    %v1282 = vpack.c.b16 %v1244, %v1242
    %v1283 = vpack.c.b16 %v1247, %v1245
    %v1284 = vpack.c.b16 %v1248, %v1246
    %v1285 = vpack.c.b16 %v1251, %v1249
    %v1286 = vpack.c.b16 %v1252, %v1250
    %v1287 = vpack.c.b16 %v1255, %v1253
    %v1288 = vpack.c.b16 %v1256, %v1254
    %1321 = vmatprep.subr.bf16.mxu0 %v1272
    %1322 = vmatpush1.bf16.msra.mxu0 %v1271
    %1323 = vmatprep.subr.bf16.mxu0 %v1270
    %1324 = vmatpush1.bf16.msra.mxu0 %v1269
    %1325 = vmatprep.subr.bf16.mxu0 %v1268
    %1326 = vmatpush1.bf16.msra.mxu0 %v1267
    %1327 = vmatprep.subr.bf16.mxu0 %v1266
    %1328 = vmatpush1.bf16.msra.mxu0 %v1265
    %1329 = vmatprep.subr.bf16.mxu0 %v1264
    %1330 = vmatpush1.bf16.msra.mxu0 %v1263
    %1331 = vmatprep.subr.bf16.mxu0 %v1262
    %1332 = vmatpush1.bf16.msra.mxu0 %v1261
    %1333 = vmatprep.subr.bf16.mxu0 %v1260
    %1334 = vmatpush1.bf16.msra.mxu0 %v1259
    %1335 = vmatprep.subr.bf16.mxu0 %v1258
    %1336 = vmatpush1.bf16.msra.mxu0 %v1257
    %1337 = vmatprep.subr.bf16.mxu0 %v1288
    %1338 = vmatpush2.bf16.msra.mxu0 %v1287
    %1339 = vmatprep.subr.bf16.mxu0 %v1286
    %1340 = vmatpush2.bf16.msra.mxu0 %v1285
    %1341 = vmatprep.subr.bf16.mxu0 %v1284
    %1342 = vmatpush2.bf16.msra.mxu0 %v1283
    %1343 = vmatprep.subr.bf16.mxu0 %v1282
    %1344 = vmatpush2.bf16.msra.mxu0 %v1281
    %1345 = vmatprep.subr.bf16.mxu0 %v1280
    %1346 = vmatpush2.bf16.msra.mxu0 %v1279
    %1347 = vmatprep.subr.bf16.mxu0 %v1278
    %1348 = vmatpush2.bf16.msra.mxu0 %v1277
    %1349 = vmatprep.subr.bf16.mxu0 %v1276
    %1350 = vmatpush2.bf16.msra.mxu0 %v1275
    %1351 = vmatprep.subr.bf16.mxu0 %v1274
    %1352 = vmatpush2.bf16.msra.mxu0 %v1273
    %1353 = vmatprep.mubr.bf16.mxu0 %v1116
    %1354 = vmatmul.mubr.bf16.gmra.mxu0 %v1115
    %v1355 = vpop.f32.mrf.mxu0
    %v1356 = vadd.f32 %v1154, %v1355
    %v1357 = vpop.f32.mrf.mxu0
    %v1358 = vadd.f32 %v1158, %v1357
    %v1359 = vpop.f32.mrf.mxu0
    %v1360 = vpop.f32.mrf.mxu0
    %1361 = vdwg.mxu0
    %v1362 = vpack.c.bf16 %v1356, %v1356
    %v1363 = vpack.c.bf16 %v1358, %v1358
    %v1364 = vld [vmem:[#allocation6] sm:$0xff]
    %v1365 = vld [vmem:[#allocation6 + $0x8] sm:$0xff]
    %v1366 = vld [vmem:[#allocation6 + $0x10] sm:$0xff]
    %v1367 = vld [vmem:[#allocation6 + $0x18] sm:$0xff]
    %v1368 = vld [vmem:[#allocation6 + $0x20] sm:$0xff]
    %v1369 = vld [vmem:[#allocation6 + $0x28] sm:$0xff]
    %v1370 = vld [vmem:[#allocation6 + $0x30] sm:$0xff]
    %v1371 = vld [vmem:[#allocation6 + $0x38] sm:$0xff]
    %v1372 = vld [vmem:[#allocation6 + $0x40] sm:$0xff]
    %v1373 = vld [vmem:[#allocation6 + $0x48] sm:$0xff]
    %v1374 = vld [vmem:[#allocation6 + $0x50] sm:$0xff]
    %v1375 = vld [vmem:[#allocation6 + $0x58] sm:$0xff]
    %v1376 = vld [vmem:[#allocation6 + $0x60] sm:$0xff]
    %v1377 = vld [vmem:[#allocation6 + $0x68] sm:$0xff]
    %v1378 = vld [vmem:[#allocation6 + $0x70] sm:$0xff]
    %v1379 = vld [vmem:[#allocation6 + $0x78] sm:$0xff]
    %v1380 = vld [vmem:[#allocation6 + $0x80] sm:$0xff]
    %v1381 = vld [vmem:[#allocation6 + $0x88] sm:$0xff]
    %v1382 = vld [vmem:[#allocation6 + $0x90] sm:$0xff]
    %v1383 = vld [vmem:[#allocation6 + $0x98] sm:$0xff]
    %v1384 = vld [vmem:[#allocation6 + $0xa0] sm:$0xff]
    %v1385 = vld [vmem:[#allocation6 + $0xa8] sm:$0xff]
    %v1386 = vld [vmem:[#allocation6 + $0xb0] sm:$0xff]
    %v1387 = vld [vmem:[#allocation6 + $0xb8] sm:$0xff]
    %v1388 = vld [vmem:[#allocation6 + $0xc0] sm:$0xff]
    %v1389 = vld [vmem:[#allocation6 + $0xc8] sm:$0xff]
    %v1390 = vld [vmem:[#allocation6 + $0xd0] sm:$0xff]
    %v1391 = vld [vmem:[#allocation6 + $0xd8] sm:$0xff]
    %v1392 = vld [vmem:[#allocation6 + $0xe0] sm:$0xff]
    %v1393 = vld [vmem:[#allocation6 + $0xe8] sm:$0xff]
    %v1394 = vld [vmem:[#allocation6 + $0xf0] sm:$0xff]
    %v1395 = vld [vmem:[#allocation6 + $0xf8] sm:$0xff]
    %v1396 = vld [vmem:[#allocation6 + $0x100] sm:$0xff]
    %v1397 = vld [vmem:[#allocation6 + $0x108] sm:$0xff]
    %v1398 = vld [vmem:[#allocation6 + $0x110] sm:$0xff]
    %v1399 = vld [vmem:[#allocation6 + $0x118] sm:$0xff]
    %v1400 = vld [vmem:[#allocation6 + $0x120] sm:$0xff]
    %v1401 = vld [vmem:[#allocation6 + $0x128] sm:$0xff]
    %v1402 = vld [vmem:[#allocation6 + $0x130] sm:$0xff]
    %v1403 = vld [vmem:[#allocation6 + $0x138] sm:$0xff]
    %v1404 = vld [vmem:[#allocation6 + $0x140] sm:$0xff]
    %v1405 = vld [vmem:[#allocation6 + $0x148] sm:$0xff]
    %v1406 = vld [vmem:[#allocation6 + $0x150] sm:$0xff]
    %v1407 = vld [vmem:[#allocation6 + $0x158] sm:$0xff]
    %v1408 = vld [vmem:[#allocation6 + $0x160] sm:$0xff]
    %v1409 = vld [vmem:[#allocation6 + $0x168] sm:$0xff]
    %v1410 = vld [vmem:[#allocation6 + $0x170] sm:$0xff]
    %v1411 = vld [vmem:[#allocation6 + $0x178] sm:$0xff]
    %v1412 = vld [vmem:[#allocation6 + $0x180] sm:$0xff]
    %v1413 = vld [vmem:[#allocation6 + $0x188] sm:$0xff]
    %v1414 = vld [vmem:[#allocation6 + $0x190] sm:$0xff]
    %v1415 = vld [vmem:[#allocation6 + $0x198] sm:$0xff]
    %v1416 = vld [vmem:[#allocation6 + $0x1a0] sm:$0xff]
    %v1417 = vld [vmem:[#allocation6 + $0x1a8] sm:$0xff]
    %v1418 = vld [vmem:[#allocation6 + $0x1b0] sm:$0xff]
    %v1419 = vld [vmem:[#allocation6 + $0x1b8] sm:$0xff]
    %v1420 = vld [vmem:[#allocation6 + $0x1c0] sm:$0xff]
    %v1421 = vld [vmem:[#allocation6 + $0x1c8] sm:$0xff]
    %v1422 = vld [vmem:[#allocation6 + $0x1d0] sm:$0xff]
    %v1423 = vld [vmem:[#allocation6 + $0x1d8] sm:$0xff]
    %v1424 = vld [vmem:[#allocation6 + $0x1e0] sm:$0xff]
    %v1425 = vld [vmem:[#allocation6 + $0x1e8] sm:$0xff]
    %v1426 = vld [vmem:[#allocation6 + $0x1f0] sm:$0xff]
    %v1427 = vld [vmem:[#allocation6 + $0x1f8] sm:$0xff]
    %v1428 = vld [vmem:[#allocation6 + $0x200] sm:$0xff]
    %v1429 = vld [vmem:[#allocation6 + $0x208] sm:$0xff]
    %v1430 = vld [vmem:[#allocation6 + $0x210] sm:$0xff]
    %v1431 = vld [vmem:[#allocation6 + $0x218] sm:$0xff]
    %v1432 = vld [vmem:[#allocation6 + $0x220] sm:$0xff]
    %v1433 = vld [vmem:[#allocation6 + $0x228] sm:$0xff]
    %v1434 = vld [vmem:[#allocation6 + $0x230] sm:$0xff]
    %v1435 = vld [vmem:[#allocation6 + $0x238] sm:$0xff]
    %v1436 = vld [vmem:[#allocation6 + $0x240] sm:$0xff]
    %v1437 = vld [vmem:[#allocation6 + $0x248] sm:$0xff]
    %v1438 = vld [vmem:[#allocation6 + $0x250] sm:$0xff]
    %v1439 = vld [vmem:[#allocation6 + $0x258] sm:$0xff]
    %v1440 = vld [vmem:[#allocation6 + $0x260] sm:$0xff]
    %v1441 = vld [vmem:[#allocation6 + $0x268] sm:$0xff]
    %v1442 = vld [vmem:[#allocation6 + $0x270] sm:$0xff]
    %v1443 = vld [vmem:[#allocation6 + $0x278] sm:$0xff]
    %v1444 = vld [vmem:[#allocation6 + $0x280] sm:$0xff]
    %v1445 = vld [vmem:[#allocation6 + $0x288] sm:$0xff]
    %v1446 = vld [vmem:[#allocation6 + $0x290] sm:$0xff]
    %v1447 = vld [vmem:[#allocation6 + $0x298] sm:$0xff]
    %v1448 = vld [vmem:[#allocation6 + $0x2a0] sm:$0xff]
    %v1449 = vld [vmem:[#allocation6 + $0x2a8] sm:$0xff]
    %v1450 = vld [vmem:[#allocation6 + $0x2b0] sm:$0xff]
    %v1451 = vld [vmem:[#allocation6 + $0x2b8] sm:$0xff]
    %v1452 = vld [vmem:[#allocation6 + $0x2c0] sm:$0xff]
    %v1453 = vld [vmem:[#allocation6 + $0x2c8] sm:$0xff]
    %v1454 = vld [vmem:[#allocation6 + $0x2d0] sm:$0xff]
    %v1455 = vld [vmem:[#allocation6 + $0x2d8] sm:$0xff]
    %v1456 = vld [vmem:[#allocation6 + $0x2e0] sm:$0xff]
    %v1457 = vld [vmem:[#allocation6 + $0x2e8] sm:$0xff]
    %v1458 = vld [vmem:[#allocation6 + $0x2f0] sm:$0xff]
    %v1459 = vld [vmem:[#allocation6 + $0x2f8] sm:$0xff]
    %v1460 = vld [vmem:[#allocation6 + $0x300] sm:$0xff]
    %v1461 = vld [vmem:[#allocation6 + $0x308] sm:$0xff]
    %v1462 = vld [vmem:[#allocation6 + $0x310] sm:$0xff]
    %v1463 = vld [vmem:[#allocation6 + $0x318] sm:$0xff]
    %v1464 = vld [vmem:[#allocation6 + $0x320] sm:$0xff]
    %v1465 = vld [vmem:[#allocation6 + $0x328] sm:$0xff]
    %v1466 = vld [vmem:[#allocation6 + $0x330] sm:$0xff]
    %v1467 = vld [vmem:[#allocation6 + $0x338] sm:$0xff]
    %v1468 = vld [vmem:[#allocation6 + $0x340] sm:$0xff]
    %v1469 = vld [vmem:[#allocation6 + $0x348] sm:$0xff]
    %v1470 = vld [vmem:[#allocation6 + $0x350] sm:$0xff]
    %v1471 = vld [vmem:[#allocation6 + $0x358] sm:$0xff]
    %v1472 = vld [vmem:[#allocation6 + $0x360] sm:$0xff]
    %v1473 = vld [vmem:[#allocation6 + $0x368] sm:$0xff]
    %v1474 = vld [vmem:[#allocation6 + $0x370] sm:$0xff]
    %v1475 = vld [vmem:[#allocation6 + $0x378] sm:$0xff]
    %v1476 = vld [vmem:[#allocation6 + $0x380] sm:$0xff]
    %v1477 = vld [vmem:[#allocation6 + $0x388] sm:$0xff]
    %v1478 = vld [vmem:[#allocation6 + $0x390] sm:$0xff]
    %v1479 = vld [vmem:[#allocation6 + $0x398] sm:$0xff]
    %v1480 = vld [vmem:[#allocation6 + $0x3a0] sm:$0xff]
    %v1481 = vld [vmem:[#allocation6 + $0x3a8] sm:$0xff]
    %v1482 = vld [vmem:[#allocation6 + $0x3b0] sm:$0xff]
    %v1483 = vld [vmem:[#allocation6 + $0x3b8] sm:$0xff]
    %v1484 = vld [vmem:[#allocation6 + $0x3c0] sm:$0xff]
    %v1485 = vld [vmem:[#allocation6 + $0x3c8] sm:$0xff]
    %v1486 = vld [vmem:[#allocation6 + $0x3d0] sm:$0xff]
    %v1487 = vld [vmem:[#allocation6 + $0x3d8] sm:$0xff]
    %v1488 = vld [vmem:[#allocation6 + $0x3e0] sm:$0xff]
    %v1489 = vld [vmem:[#allocation6 + $0x3e8] sm:$0xff]
    %v1490 = vld [vmem:[#allocation6 + $0x3f0] sm:$0xff]
    %v1491 = vld [vmem:[#allocation6 + $0x3f8] sm:$0xff]
    %v1492 = vld [vmem:[%s6] sm:$0xff]
    %v1494 = vlaneseq
    %v1495 = vshrl.u32 %v1494, 7
    %v1496 = vsub.s32 0, %v1495
    %v1497 = vrot.slane %v1492, %v1496
    %v1498 = vlaneseq
    %v1499 = vshrl.u32 %v1498, 7
    %v1500 = vsub.s32 1, %v1499
    %v1501 = vrot.slane %v1492, %v1500
    %v1502 = vlaneseq
    %v1503 = vshrl.u32 %v1502, 7
    %v1504 = vsub.s32 2, %v1503
    %v1505 = vrot.slane %v1492, %v1504
    %v1506 = vlaneseq
    %v1507 = vshrl.u32 %v1506, 7
    %v1508 = vsub.s32 3, %v1507
    %v1509 = vrot.slane %v1492, %v1508
    %v1510 = vlaneseq
    %v1511 = vshrl.u32 %v1510, 7
    %v1512 = vsub.s32 4, %v1511
    %v1513 = vrot.slane %v1492, %v1512
    %v1514 = vlaneseq
    %v1515 = vshrl.u32 %v1514, 7
    %v1516 = vsub.s32 5, %v1515
    %v1517 = vrot.slane %v1492, %v1516
    %v1518 = vlaneseq
    %v1519 = vshrl.u32 %v1518, 7
    %v1520 = vsub.s32 6, %v1519
    %v1521 = vrot.slane %v1492, %v1520
    %v1522 = vlaneseq
    %v1523 = vshrl.u32 %v1522, 7
    %v1524 = vsub.s32 7, %v1523
    %v1525 = vrot.slane %v1492, %v1524
    %v1662 = vunpack.c.l.b16 %v1364
    %v1663 = vunpack.c.h.b16 %v1364
    %v1664 = vunpack.c.l.b16 %v1365
    %v1665 = vunpack.c.h.b16 %v1365
    %v1666 = vunpack.c.l.b16 %v1366
    %v1667 = vunpack.c.h.b16 %v1366
    %v1668 = vunpack.c.l.b16 %v1367
    %v1669 = vunpack.c.h.b16 %v1367
    %v1670 = vunpack.c.l.b16 %v1368
    %v1671 = vunpack.c.h.b16 %v1368
    %v1672 = vunpack.c.l.b16 %v1369
    %v1673 = vunpack.c.h.b16 %v1369
    %v1674 = vunpack.c.l.b16 %v1370
    %v1675 = vunpack.c.h.b16 %v1370
    %v1676 = vunpack.c.l.b16 %v1371
    %v1677 = vunpack.c.h.b16 %v1371
    %v1678 = vunpack.c.l.b16 %v1372
    %v1679 = vunpack.c.h.b16 %v1372
    %v1680 = vunpack.c.l.b16 %v1373
    %v1681 = vunpack.c.h.b16 %v1373
    %v1682 = vunpack.c.l.b16 %v1374
    %v1683 = vunpack.c.h.b16 %v1374
    %v1684 = vunpack.c.l.b16 %v1375
    %v1685 = vunpack.c.h.b16 %v1375
    %v1686 = vunpack.c.l.b16 %v1376
    %v1687 = vunpack.c.h.b16 %v1376
    %v1688 = vunpack.c.l.b16 %v1377
    %v1689 = vunpack.c.h.b16 %v1377
    %v1690 = vunpack.c.l.b16 %v1378
    %v1691 = vunpack.c.h.b16 %v1378
    %v1692 = vunpack.c.l.b16 %v1379
    %v1693 = vunpack.c.h.b16 %v1379
    %v1694 = vunpack.c.l.b16 %v1380
    %v1695 = vunpack.c.h.b16 %v1380
    %v1696 = vunpack.c.l.b16 %v1381
    %v1697 = vunpack.c.h.b16 %v1381
    %v1698 = vunpack.c.l.b16 %v1382
    %v1699 = vunpack.c.h.b16 %v1382
    %v1700 = vunpack.c.l.b16 %v1383
    %v1701 = vunpack.c.h.b16 %v1383
    %v1702 = vunpack.c.l.b16 %v1384
    %v1703 = vunpack.c.h.b16 %v1384
    %v1704 = vunpack.c.l.b16 %v1385
    %v1705 = vunpack.c.h.b16 %v1385
    %v1706 = vunpack.c.l.b16 %v1386
    %v1707 = vunpack.c.h.b16 %v1386
    %v1708 = vunpack.c.l.b16 %v1387
    %v1709 = vunpack.c.h.b16 %v1387
    %v1710 = vunpack.c.l.b16 %v1388
    %v1711 = vunpack.c.h.b16 %v1388
    %v1712 = vunpack.c.l.b16 %v1389
    %v1713 = vunpack.c.h.b16 %v1389
    %v1714 = vunpack.c.l.b16 %v1390
    %v1715 = vunpack.c.h.b16 %v1390
    %v1716 = vunpack.c.l.b16 %v1391
    %v1717 = vunpack.c.h.b16 %v1391
    %v1718 = vunpack.c.l.b16 %v1392
    %v1719 = vunpack.c.h.b16 %v1392
    %v1720 = vunpack.c.l.b16 %v1393
    %v1721 = vunpack.c.h.b16 %v1393
    %v1722 = vunpack.c.l.b16 %v1394
    %v1723 = vunpack.c.h.b16 %v1394
    %v1724 = vunpack.c.l.b16 %v1395
    %v1725 = vunpack.c.h.b16 %v1395
    %v1726 = vunpack.c.l.b16 %v1396
    %v1727 = vunpack.c.h.b16 %v1396
    %v1728 = vunpack.c.l.b16 %v1397
    %v1729 = vunpack.c.h.b16 %v1397
    %v1730 = vunpack.c.l.b16 %v1398
    %v1731 = vunpack.c.h.b16 %v1398
    %v1732 = vunpack.c.l.b16 %v1399
    %v1733 = vunpack.c.h.b16 %v1399
    %v1734 = vunpack.c.l.b16 %v1400
    %v1735 = vunpack.c.h.b16 %v1400
    %v1736 = vunpack.c.l.b16 %v1401
    %v1737 = vunpack.c.h.b16 %v1401
    %v1738 = vunpack.c.l.b16 %v1402
    %v1739 = vunpack.c.h.b16 %v1402
    %v1740 = vunpack.c.l.b16 %v1403
    %v1741 = vunpack.c.h.b16 %v1403
    %v1742 = vunpack.c.l.b16 %v1404
    %v1743 = vunpack.c.h.b16 %v1404
    %v1744 = vunpack.c.l.b16 %v1405
    %v1745 = vunpack.c.h.b16 %v1405
    %v1746 = vunpack.c.l.b16 %v1406
    %v1747 = vunpack.c.h.b16 %v1406
    %v1748 = vunpack.c.l.b16 %v1407
    %v1749 = vunpack.c.h.b16 %v1407
    %v1750 = vunpack.c.l.b16 %v1408
    %v1751 = vunpack.c.h.b16 %v1408
    %v1752 = vunpack.c.l.b16 %v1409
    %v1753 = vunpack.c.h.b16 %v1409
    %v1754 = vunpack.c.l.b16 %v1410
    %v1755 = vunpack.c.h.b16 %v1410
    %v1756 = vunpack.c.l.b16 %v1411
    %v1757 = vunpack.c.h.b16 %v1411
    %v1758 = vunpack.c.l.b16 %v1412
    %v1759 = vunpack.c.h.b16 %v1412
    %v1760 = vunpack.c.l.b16 %v1413
    %v1761 = vunpack.c.h.b16 %v1413
    %v1762 = vunpack.c.l.b16 %v1414
    %v1763 = vunpack.c.h.b16 %v1414
    %v1764 = vunpack.c.l.b16 %v1415
    %v1765 = vunpack.c.h.b16 %v1415
    %v1766 = vunpack.c.l.b16 %v1416
    %v1767 = vunpack.c.h.b16 %v1416
    %v1768 = vunpack.c.l.b16 %v1417
    %v1769 = vunpack.c.h.b16 %v1417
    %v1770 = vunpack.c.l.b16 %v1418
    %v1771 = vunpack.c.h.b16 %v1418
    %v1772 = vunpack.c.l.b16 %v1419
    %v1773 = vunpack.c.h.b16 %v1419
    %v1774 = vunpack.c.l.b16 %v1420
    %v1775 = vunpack.c.h.b16 %v1420
    %v1776 = vunpack.c.l.b16 %v1421
    %v1777 = vunpack.c.h.b16 %v1421
    %v1778 = vunpack.c.l.b16 %v1422
    %v1779 = vunpack.c.h.b16 %v1422
    %v1780 = vunpack.c.l.b16 %v1423
    %v1781 = vunpack.c.h.b16 %v1423
    %v1782 = vunpack.c.l.b16 %v1424
    %v1783 = vunpack.c.h.b16 %v1424
    %v1784 = vunpack.c.l.b16 %v1425
    %v1785 = vunpack.c.h.b16 %v1425
    %v1786 = vunpack.c.l.b16 %v1426
    %v1787 = vunpack.c.h.b16 %v1426
    %v1788 = vunpack.c.l.b16 %v1427
    %v1789 = vunpack.c.h.b16 %v1427
    %v1790 = vunpack.c.l.b16 %v1428
    %v1791 = vunpack.c.h.b16 %v1428
    %v1792 = vunpack.c.l.b16 %v1429
    %v1793 = vunpack.c.h.b16 %v1429
    %v1794 = vunpack.c.l.b16 %v1430
    %v1795 = vunpack.c.h.b16 %v1430
    %v1796 = vunpack.c.l.b16 %v1431
    %v1797 = vunpack.c.h.b16 %v1431
    %v1798 = vunpack.c.l.b16 %v1432
    %v1799 = vunpack.c.h.b16 %v1432
    %v1800 = vunpack.c.l.b16 %v1433
    %v1801 = vunpack.c.h.b16 %v1433
    %v1802 = vunpack.c.l.b16 %v1434
    %v1803 = vunpack.c.h.b16 %v1434
    %v1804 = vunpack.c.l.b16 %v1435
    %v1805 = vunpack.c.h.b16 %v1435
    %v1806 = vunpack.c.l.b16 %v1436
    %v1807 = vunpack.c.h.b16 %v1436
    %v1808 = vunpack.c.l.b16 %v1437
    %v1809 = vunpack.c.h.b16 %v1437
    %v1810 = vunpack.c.l.b16 %v1438
    %v1811 = vunpack.c.h.b16 %v1438
    %v1812 = vunpack.c.l.b16 %v1439
    %v1813 = vunpack.c.h.b16 %v1439
    %v1814 = vunpack.c.l.b16 %v1440
    %v1815 = vunpack.c.h.b16 %v1440
    %v1816 = vunpack.c.l.b16 %v1441
    %v1817 = vunpack.c.h.b16 %v1441
    %v1818 = vunpack.c.l.b16 %v1442
    %v1819 = vunpack.c.h.b16 %v1442
    %v1820 = vunpack.c.l.b16 %v1443
    %v1821 = vunpack.c.h.b16 %v1443
    %v1822 = vunpack.c.l.b16 %v1444
    %v1823 = vunpack.c.h.b16 %v1444
    %v1824 = vunpack.c.l.b16 %v1445
    %v1825 = vunpack.c.h.b16 %v1445
    %v1826 = vunpack.c.l.b16 %v1446
    %v1827 = vunpack.c.h.b16 %v1446
    %v1828 = vunpack.c.l.b16 %v1447
    %v1829 = vunpack.c.h.b16 %v1447
    %v1830 = vunpack.c.l.b16 %v1448
    %v1831 = vunpack.c.h.b16 %v1448
    %v1832 = vunpack.c.l.b16 %v1449
    %v1833 = vunpack.c.h.b16 %v1449
    %v1834 = vunpack.c.l.b16 %v1450
    %v1835 = vunpack.c.h.b16 %v1450
    %v1836 = vunpack.c.l.b16 %v1451
    %v1837 = vunpack.c.h.b16 %v1451
    %v1838 = vunpack.c.l.b16 %v1452
    %v1839 = vunpack.c.h.b16 %v1452
    %v1840 = vunpack.c.l.b16 %v1453
    %v1841 = vunpack.c.h.b16 %v1453
    %v1842 = vunpack.c.l.b16 %v1454
    %v1843 = vunpack.c.h.b16 %v1454
    %v1844 = vunpack.c.l.b16 %v1455
    %v1845 = vunpack.c.h.b16 %v1455
    %v1846 = vunpack.c.l.b16 %v1456
    %v1847 = vunpack.c.h.b16 %v1456
    %v1848 = vunpack.c.l.b16 %v1457
    %v1849 = vunpack.c.h.b16 %v1457
    %v1850 = vunpack.c.l.b16 %v1458
    %v1851 = vunpack.c.h.b16 %v1458
    %v1852 = vunpack.c.l.b16 %v1459
    %v1853 = vunpack.c.h.b16 %v1459
    %v1854 = vunpack.c.l.b16 %v1460
    %v1855 = vunpack.c.h.b16 %v1460
    %v1856 = vunpack.c.l.b16 %v1461
    %v1857 = vunpack.c.h.b16 %v1461
    %v1858 = vunpack.c.l.b16 %v1462
    %v1859 = vunpack.c.h.b16 %v1462
    %v1860 = vunpack.c.l.b16 %v1463
    %v1861 = vunpack.c.h.b16 %v1463
    %v1862 = vunpack.c.l.b16 %v1464
    %v1863 = vunpack.c.h.b16 %v1464
    %v1864 = vunpack.c.l.b16 %v1465
    %v1865 = vunpack.c.h.b16 %v1465
    %v1866 = vunpack.c.l.b16 %v1466
    %v1867 = vunpack.c.h.b16 %v1466
    %v1868 = vunpack.c.l.b16 %v1467
    %v1869 = vunpack.c.h.b16 %v1467
    %v1870 = vunpack.c.l.b16 %v1468
    %v1871 = vunpack.c.h.b16 %v1468
    %v1872 = vunpack.c.l.b16 %v1469
    %v1873 = vunpack.c.h.b16 %v1469
    %v1874 = vunpack.c.l.b16 %v1470
    %v1875 = vunpack.c.h.b16 %v1470
    %v1876 = vunpack.c.l.b16 %v1471
    %v1877 = vunpack.c.h.b16 %v1471
    %v1878 = vunpack.c.l.b16 %v1472
    %v1879 = vunpack.c.h.b16 %v1472
    %v1880 = vunpack.c.l.b16 %v1473
    %v1881 = vunpack.c.h.b16 %v1473
    %v1882 = vunpack.c.l.b16 %v1474
    %v1883 = vunpack.c.h.b16 %v1474
    %v1884 = vunpack.c.l.b16 %v1475
    %v1885 = vunpack.c.h.b16 %v1475
    %v1886 = vunpack.c.l.b16 %v1476
    %v1887 = vunpack.c.h.b16 %v1476
    %v1888 = vunpack.c.l.b16 %v1477
    %v1889 = vunpack.c.h.b16 %v1477
    %v1890 = vunpack.c.l.b16 %v1478
    %v1891 = vunpack.c.h.b16 %v1478
    %v1892 = vunpack.c.l.b16 %v1479
    %v1893 = vunpack.c.h.b16 %v1479
    %v1894 = vunpack.c.l.b16 %v1480
    %v1895 = vunpack.c.h.b16 %v1480
    %v1896 = vunpack.c.l.b16 %v1481
    %v1897 = vunpack.c.h.b16 %v1481
    %v1898 = vunpack.c.l.b16 %v1482
    %v1899 = vunpack.c.h.b16 %v1482
    %v1900 = vunpack.c.l.b16 %v1483
    %v1901 = vunpack.c.h.b16 %v1483
    %v1902 = vunpack.c.l.b16 %v1484
    %v1903 = vunpack.c.h.b16 %v1484
    %v1904 = vunpack.c.l.b16 %v1485
    %v1905 = vunpack.c.h.b16 %v1485
    %v1906 = vunpack.c.l.b16 %v1486
    %v1907 = vunpack.c.h.b16 %v1486
    %v1908 = vunpack.c.l.b16 %v1487
    %v1909 = vunpack.c.h.b16 %v1487
    %v1910 = vunpack.c.l.b16 %v1488
    %v1911 = vunpack.c.h.b16 %v1488
    %v1912 = vunpack.c.l.b16 %v1489
    %v1913 = vunpack.c.h.b16 %v1489
    %v1914 = vunpack.c.l.b16 %v1490
    %v1915 = vunpack.c.h.b16 %v1490
    %v1916 = vunpack.c.l.b16 %v1491
    %v1917 = vunpack.c.h.b16 %v1491
    %v1918 = vpack.c.b16 %v1670, %v1662
    %v1919 = vpack.c.b16 %v1671, %v1663
    %v1920 = vpack.c.b16 %v1672, %v1664
    %v1921 = vpack.c.b16 %v1673, %v1665
    %v1922 = vpack.c.b16 %v1674, %v1666
    %v1923 = vpack.c.b16 %v1675, %v1667
    %v1924 = vpack.c.b16 %v1676, %v1668
    %v1925 = vpack.c.b16 %v1677, %v1669
    %v1926 = vpack.c.b16 %v1686, %v1678
    %v1927 = vpack.c.b16 %v1687, %v1679
    %v1928 = vpack.c.b16 %v1688, %v1680
    %v1929 = vpack.c.b16 %v1689, %v1681
    %v1930 = vpack.c.b16 %v1690, %v1682
    %v1931 = vpack.c.b16 %v1691, %v1683
    %v1932 = vpack.c.b16 %v1692, %v1684
    %v1933 = vpack.c.b16 %v1693, %v1685
    %v1934 = vpack.c.b16 %v1702, %v1694
    %v1935 = vpack.c.b16 %v1703, %v1695
    %v1936 = vpack.c.b16 %v1704, %v1696
    %v1937 = vpack.c.b16 %v1705, %v1697
    %v1938 = vpack.c.b16 %v1706, %v1698
    %v1939 = vpack.c.b16 %v1707, %v1699
    %v1940 = vpack.c.b16 %v1708, %v1700
    %v1941 = vpack.c.b16 %v1709, %v1701
    %v1942 = vpack.c.b16 %v1718, %v1710
    %v1943 = vpack.c.b16 %v1719, %v1711
    %v1944 = vpack.c.b16 %v1720, %v1712
    %v1945 = vpack.c.b16 %v1721, %v1713
    %v1946 = vpack.c.b16 %v1722, %v1714
    %v1947 = vpack.c.b16 %v1723, %v1715
    %v1948 = vpack.c.b16 %v1724, %v1716
    %v1949 = vpack.c.b16 %v1725, %v1717
    %v1950 = vpack.c.b16 %v1734, %v1726
    %v1951 = vpack.c.b16 %v1735, %v1727
    %v1952 = vpack.c.b16 %v1736, %v1728
    %v1953 = vpack.c.b16 %v1737, %v1729
    %v1954 = vpack.c.b16 %v1738, %v1730
    %v1955 = vpack.c.b16 %v1739, %v1731
    %v1956 = vpack.c.b16 %v1740, %v1732
    %v1957 = vpack.c.b16 %v1741, %v1733
    %v1958 = vpack.c.b16 %v1750, %v1742
    %v1959 = vpack.c.b16 %v1751, %v1743
    %v1960 = vpack.c.b16 %v1752, %v1744
    %v1961 = vpack.c.b16 %v1753, %v1745
    %v1962 = vpack.c.b16 %v1754, %v1746
    %v1963 = vpack.c.b16 %v1755, %v1747
    %v1964 = vpack.c.b16 %v1756, %v1748
    %v1965 = vpack.c.b16 %v1757, %v1749
    %v1966 = vpack.c.b16 %v1766, %v1758
    %v1967 = vpack.c.b16 %v1767, %v1759
    %v1968 = vpack.c.b16 %v1768, %v1760
    %v1969 = vpack.c.b16 %v1769, %v1761
    %v1970 = vpack.c.b16 %v1770, %v1762
    %v1971 = vpack.c.b16 %v1771, %v1763
    %v1972 = vpack.c.b16 %v1772, %v1764
    %v1973 = vpack.c.b16 %v1773, %v1765
    %v1974 = vpack.c.b16 %v1782, %v1774
    %v1975 = vpack.c.b16 %v1783, %v1775
    %v1976 = vpack.c.b16 %v1784, %v1776
    %v1977 = vpack.c.b16 %v1785, %v1777
    %v1978 = vpack.c.b16 %v1786, %v1778
    %v1979 = vpack.c.b16 %v1787, %v1779
    %v1980 = vpack.c.b16 %v1788, %v1780
    %v1981 = vpack.c.b16 %v1789, %v1781
    %v1982 = vpack.c.b16 %v1798, %v1790
    %v1983 = vpack.c.b16 %v1799, %v1791
    %v1984 = vpack.c.b16 %v1800, %v1792
    %v1985 = vpack.c.b16 %v1801, %v1793
    %v1986 = vpack.c.b16 %v1802, %v1794
    %v1987 = vpack.c.b16 %v1803, %v1795
    %v1988 = vpack.c.b16 %v1804, %v1796
    %v1989 = vpack.c.b16 %v1805, %v1797
    %v1990 = vpack.c.b16 %v1814, %v1806
    %v1991 = vpack.c.b16 %v1815, %v1807
    %v1992 = vpack.c.b16 %v1816, %v1808
    %v1993 = vpack.c.b16 %v1817, %v1809
    %v1994 = vpack.c.b16 %v1818, %v1810
    %v1995 = vpack.c.b16 %v1819, %v1811
    %v1996 = vpack.c.b16 %v1820, %v1812
    %v1997 = vpack.c.b16 %v1821, %v1813
    %v1998 = vpack.c.b16 %v1830, %v1822
    %v1999 = vpack.c.b16 %v1831, %v1823
    %v2000 = vpack.c.b16 %v1832, %v1824
    %v2001 = vpack.c.b16 %v1833, %v1825
    %v2002 = vpack.c.b16 %v1834, %v1826
    %v2003 = vpack.c.b16 %v1835, %v1827
    %v2004 = vpack.c.b16 %v1836, %v1828
    %v2005 = vpack.c.b16 %v1837, %v1829
    %v2006 = vpack.c.b16 %v1846, %v1838
    %v2007 = vpack.c.b16 %v1847, %v1839
    %v2008 = vpack.c.b16 %v1848, %v1840
    %v2009 = vpack.c.b16 %v1849, %v1841
    %v2010 = vpack.c.b16 %v1850, %v1842
    %v2011 = vpack.c.b16 %v1851, %v1843
    %v2012 = vpack.c.b16 %v1852, %v1844
    %v2013 = vpack.c.b16 %v1853, %v1845
    %v2014 = vpack.c.b16 %v1862, %v1854
    %v2015 = vpack.c.b16 %v1863, %v1855
    %v2016 = vpack.c.b16 %v1864, %v1856
    %v2017 = vpack.c.b16 %v1865, %v1857
    %v2018 = vpack.c.b16 %v1866, %v1858
    %v2019 = vpack.c.b16 %v1867, %v1859
    %v2020 = vpack.c.b16 %v1868, %v1860
    %v2021 = vpack.c.b16 %v1869, %v1861
    %v2022 = vpack.c.b16 %v1878, %v1870
    %v2023 = vpack.c.b16 %v1879, %v1871
    %v2024 = vpack.c.b16 %v1880, %v1872
    %v2025 = vpack.c.b16 %v1881, %v1873
    %v2026 = vpack.c.b16 %v1882, %v1874
    %v2027 = vpack.c.b16 %v1883, %v1875
    %v2028 = vpack.c.b16 %v1884, %v1876
    %v2029 = vpack.c.b16 %v1885, %v1877
    %v2030 = vpack.c.b16 %v1894, %v1886
    %v2031 = vpack.c.b16 %v1895, %v1887
    %v2032 = vpack.c.b16 %v1896, %v1888
    %v2033 = vpack.c.b16 %v1897, %v1889
    %v2034 = vpack.c.b16 %v1898, %v1890
    %v2035 = vpack.c.b16 %v1899, %v1891
    %v2036 = vpack.c.b16 %v1900, %v1892
    %v2037 = vpack.c.b16 %v1901, %v1893
    %v2038 = vpack.c.b16 %v1910, %v1902
    %v2039 = vpack.c.b16 %v1911, %v1903
    %v2040 = vpack.c.b16 %v1912, %v1904
    %v2041 = vpack.c.b16 %v1913, %v1905
    %v2042 = vpack.c.b16 %v1914, %v1906
    %v2043 = vpack.c.b16 %v1915, %v1907
    %v2044 = vpack.c.b16 %v1916, %v1908
    %v2045 = vpack.c.b16 %v1917, %v1909
    %2174 = vmatprep.subr.bf16.mxu0 %v1975
    %2175 = vmatpush1.bf16.msra.mxu0 %v1974
    %2176 = vmatprep.subr.bf16.mxu0 %v1967
    %2177 = vmatpush1.bf16.msra.mxu0 %v1966
    %2178 = vmatprep.subr.bf16.mxu0 %v1959
    %2179 = vmatpush1.bf16.msra.mxu0 %v1958
    %2180 = vmatprep.subr.bf16.mxu0 %v1951
    %2181 = vmatpush1.bf16.msra.mxu0 %v1950
    %2182 = vmatprep.subr.bf16.mxu0 %v1943
    %2183 = vmatpush1.bf16.msra.mxu0 %v1942
    %2184 = vmatprep.subr.bf16.mxu0 %v1935
    %2185 = vmatpush1.bf16.msra.mxu0 %v1934
    %2186 = vmatprep.subr.bf16.mxu0 %v1927
    %2187 = vmatpush1.bf16.msra.mxu0 %v1926
    %2188 = vmatprep.subr.bf16.mxu0 %v1919
    %2189 = vmatpush1.bf16.msra.mxu0 %v1918
    %2190 = vmatprep.subr.bf16.mxu0 %v2039
    %2191 = vmatpush2.bf16.msra.mxu0 %v2038
    %2192 = vmatprep.subr.bf16.mxu0 %v2031
    %2193 = vmatpush2.bf16.msra.mxu0 %v2030
    %2194 = vmatprep.subr.bf16.mxu0 %v2023
    %2195 = vmatpush2.bf16.msra.mxu0 %v2022
    %2196 = vmatprep.subr.bf16.mxu0 %v2015
    %2197 = vmatpush2.bf16.msra.mxu0 %v2014
    %2198 = vmatprep.subr.bf16.mxu0 %v2007
    %2199 = vmatpush2.bf16.msra.mxu0 %v2006
    %2200 = vmatprep.subr.bf16.mxu0 %v1999
    %2201 = vmatpush2.bf16.msra.mxu0 %v1998
    %2202 = vmatprep.subr.bf16.mxu0 %v1991
    %2203 = vmatpush2.bf16.msra.mxu0 %v1990
    %2204 = vmatprep.subr.bf16.mxu0 %v1983
    %2205 = vmatpush2.bf16.msra.mxu0 %v1982
    %2206 = vmatprep.mubr.bf16.mxu0 %v1363
    %2207 = vmatmul.mubr.bf16.gmra.mxu0 %v1362
    %v2208 = vpop.f32.mrf.mxu0
    %v2209 = vadd.f32 %v1497, %v2208
    %v2210 = vpop.f32.mrf.mxu0
    %v2211 = vadd.f32 %v1501, %v2210
    %v2212 = vpop.f32.mrf.mxu0
    %v2213 = vpop.f32.mrf.mxu0
    %2214 = vdwg.mxu0
    %2215 = vmatprep.subr.bf16.mxu0 %v1977
    %2216 = vmatpush1.bf16.msra.mxu0 %v1976
    %2217 = vmatprep.subr.bf16.mxu0 %v1969
    %2218 = vmatpush1.bf16.msra.mxu0 %v1968
    %2219 = vmatprep.subr.bf16.mxu0 %v1961
    %2220 = vmatpush1.bf16.msra.mxu0 %v1960
    %2221 = vmatprep.subr.bf16.mxu0 %v1953
    %2222 = vmatpush1.bf16.msra.mxu0 %v1952
    %2223 = vmatprep.subr.bf16.mxu0 %v1945
    %2224 = vmatpush1.bf16.msra.mxu0 %v1944
    %2225 = vmatprep.subr.bf16.mxu0 %v1937
    %2226 = vmatpush1.bf16.msra.mxu0 %v1936
    %2227 = vmatprep.subr.bf16.mxu0 %v1929
    %2228 = vmatpush1.bf16.msra.mxu0 %v1928
    %2229 = vmatprep.subr.bf16.mxu0 %v1921
    %2230 = vmatpush1.bf16.msra.mxu0 %v1920
    %2231 = vmatprep.subr.bf16.mxu0 %v2041
    %2232 = vmatpush2.bf16.msra.mxu0 %v2040
    %2233 = vmatprep.subr.bf16.mxu0 %v2033
    %2234 = vmatpush2.bf16.msra.mxu0 %v2032
    %2235 = vmatprep.subr.bf16.mxu0 %v2025
    %2236 = vmatpush2.bf16.msra.mxu0 %v2024
    %2237 = vmatprep.subr.bf16.mxu0 %v2017
    %2238 = vmatpush2.bf16.msra.mxu0 %v2016
    %2239 = vmatprep.subr.bf16.mxu0 %v2009
    %2240 = vmatpush2.bf16.msra.mxu0 %v2008
    %2241 = vmatprep.subr.bf16.mxu0 %v2001
    %2242 = vmatpush2.bf16.msra.mxu0 %v2000
    %2243 = vmatprep.subr.bf16.mxu0 %v1993
    %2244 = vmatpush2.bf16.msra.mxu0 %v1992
    %2245 = vmatprep.subr.bf16.mxu0 %v1985
    %2246 = vmatpush2.bf16.msra.mxu0 %v1984
    %2247 = vmatprep.mubr.bf16.mxu0 %v1363
    %2248 = vmatmul.mubr.bf16.gmra.mxu0 %v1362
    %v2249 = vpop.f32.mrf.mxu0
    %v2250 = vadd.f32 %v1505, %v2249
    %v2251 = vpop.f32.mrf.mxu0
    %v2252 = vadd.f32 %v1509, %v2251
    %v2253 = vpop.f32.mrf.mxu0
    %v2254 = vpop.f32.mrf.mxu0
    %2255 = vdwg.mxu0
    %2256 = vmatprep.subr.bf16.mxu0 %v1979
    %2257 = vmatpush1.bf16.msra.mxu0 %v1978
    %2258 = vmatprep.subr.bf16.mxu0 %v1971
    %2259 = vmatpush1.bf16.msra.mxu0 %v1970
    %2260 = vmatprep.subr.bf16.mxu0 %v1963
    %2261 = vmatpush1.bf16.msra.mxu0 %v1962
    %2262 = vmatprep.subr.bf16.mxu0 %v1955
    %2263 = vmatpush1.bf16.msra.mxu0 %v1954
    %2264 = vmatprep.subr.bf16.mxu0 %v1947
    %2265 = vmatpush1.bf16.msra.mxu0 %v1946
    %2266 = vmatprep.subr.bf16.mxu0 %v1939
    %2267 = vmatpush1.bf16.msra.mxu0 %v1938
    %2268 = vmatprep.subr.bf16.mxu0 %v1931
    %2269 = vmatpush1.bf16.msra.mxu0 %v1930
    %2270 = vmatprep.subr.bf16.mxu0 %v1923
    %2271 = vmatpush1.bf16.msra.mxu0 %v1922
    %2272 = vmatprep.subr.bf16.mxu0 %v2043
    %2273 = vmatpush2.bf16.msra.mxu0 %v2042
    %2274 = vmatprep.subr.bf16.mxu0 %v2035
    %2275 = vmatpush2.bf16.msra.mxu0 %v2034
    %2276 = vmatprep.subr.bf16.mxu0 %v2027
    %2277 = vmatpush2.bf16.msra.mxu0 %v2026
    %2278 = vmatprep.subr.bf16.mxu0 %v2019
    %2279 = vmatpush2.bf16.msra.mxu0 %v2018
    %2280 = vmatprep.subr.bf16.mxu0 %v2011
    %2281 = vmatpush2.bf16.msra.mxu0 %v2010
    %2282 = vmatprep.subr.bf16.mxu0 %v2003
    %2283 = vmatpush2.bf16.msra.mxu0 %v2002
    %2284 = vmatprep.subr.bf16.mxu0 %v1995
    %2285 = vmatpush2.bf16.msra.mxu0 %v1994
    %2286 = vmatprep.subr.bf16.mxu0 %v1987
    %2287 = vmatpush2.bf16.msra.mxu0 %v1986
    %2288 = vmatprep.mubr.bf16.mxu0 %v1363
    %2289 = vmatmul.mubr.bf16.gmra.mxu0 %v1362
    %v2290 = vpop.f32.mrf.mxu0
    %v2291 = vadd.f32 %v1513, %v2290
    %v2292 = vpop.f32.mrf.mxu0
    %v2293 = vadd.f32 %v1517, %v2292
    %v2294 = vpop.f32.mrf.mxu0
    %v2295 = vpop.f32.mrf.mxu0
    %2296 = vdwg.mxu0
    %2297 = vmatprep.subr.bf16.mxu0 %v1981
    %2298 = vmatpush1.bf16.msra.mxu0 %v1980
    %2299 = vmatprep.subr.bf16.mxu0 %v1973
    %2300 = vmatpush1.bf16.msra.mxu0 %v1972
    %2301 = vmatprep.subr.bf16.mxu0 %v1965
    %2302 = vmatpush1.bf16.msra.mxu0 %v1964
    %2303 = vmatprep.subr.bf16.mxu0 %v1957
    %2304 = vmatpush1.bf16.msra.mxu0 %v1956
    %2305 = vmatprep.subr.bf16.mxu0 %v1949
    %2306 = vmatpush1.bf16.msra.mxu0 %v1948
    %2307 = vmatprep.subr.bf16.mxu0 %v1941
    %2308 = vmatpush1.bf16.msra.mxu0 %v1940
    %2309 = vmatprep.subr.bf16.mxu0 %v1933
    %2310 = vmatpush1.bf16.msra.mxu0 %v1932
    %2311 = vmatprep.subr.bf16.mxu0 %v1925
    %2312 = vmatpush1.bf16.msra.mxu0 %v1924
    %2313 = vmatprep.subr.bf16.mxu0 %v2045
    %2314 = vmatpush2.bf16.msra.mxu0 %v2044
    %2315 = vmatprep.subr.bf16.mxu0 %v2037
    %2316 = vmatpush2.bf16.msra.mxu0 %v2036
    %2317 = vmatprep.subr.bf16.mxu0 %v2029
    %2318 = vmatpush2.bf16.msra.mxu0 %v2028
    %2319 = vmatprep.subr.bf16.mxu0 %v2021
    %2320 = vmatpush2.bf16.msra.mxu0 %v2020
    %2321 = vmatprep.subr.bf16.mxu0 %v2013
    %2322 = vmatpush2.bf16.msra.mxu0 %v2012
    %2323 = vmatprep.subr.bf16.mxu0 %v2005
    %2324 = vmatpush2.bf16.msra.mxu0 %v2004
    %2325 = vmatprep.subr.bf16.mxu0 %v1997
    %2326 = vmatpush2.bf16.msra.mxu0 %v1996
    %2327 = vmatprep.subr.bf16.mxu0 %v1989
    %2328 = vmatpush2.bf16.msra.mxu0 %v1988
    %2329 = vmatprep.mubr.bf16.mxu0 %v1363
    %2330 = vmatmul.mubr.bf16.gmra.mxu0 %v1362
    %v2331 = vpop.f32.mrf.mxu0
    %v2332 = vadd.f32 %v1521, %v2331
    %v2333 = vpop.f32.mrf.mxu0
    %v2334 = vadd.f32 %v1525, %v2333
    %v2335 = vpop.f32.mrf.mxu0
    %v2336 = vpop.f32.mrf.mxu0
    %2337 = vdwg.mxu0
    %v2346 = vcombine.low %v2209, %v2211
    %v2347 = vcombine.high %v2209, %v2211
    %v2348 = vcombine.low %v2250, %v2252
    %v2349 = vcombine.high %v2250, %v2252
    %v2351 = vunpack.c.l.s4 1983009808
    %v2352 = vunpack.c.0.s8 %v2351
    %v2353 = vlaneseq
    %v2354 = vshrl.u32 %v2353, 7
    %v2355 = vsub.s32 %v2352, %v2354
    %v2356 = vrot.slane %v2346, %v2355
    %v2358 = vunpack.c.l.s4 1983009808
    %v2359 = vunpack.c.0.s8 %v2358
    %v2360 = vlaneseq
    %v2361 = vshrl.u32 %v2360, 7
    %v2362 = vsub.s32 %v2359, %v2361
    %v2363 = vrot.slane %v2347, %v2362
    %v2365 = vunpack.c.l.s4 1983009808
    %v2366 = vunpack.c.0.s8 %v2365
    %v2367 = vlaneseq
    %v2368 = vshrl.u32 %v2367, 7
    %v2369 = vsub.s32 %v2366, %v2368
    %v2370 = vrot.slane %v2348, %v2369
    %v2372 = vunpack.c.l.s4 1983009808
    %v2373 = vunpack.c.0.s8 %v2372
    %v2374 = vlaneseq
    %v2375 = vshrl.u32 %v2374, 7
    %v2376 = vsub.s32 %v2373, %v2375
    %v2377 = vrot.slane %v2349, %v2376
    %v2378 = vcombine.low %v2356, %v2370
    %v2379 = vcombine.high %v2356, %v2370
    %v2380 = vcombine.low %v2363, %v2377
    %v2381 = vcombine.high %v2363, %v2377
    %v2382 = vcombine.low %v2291, %v2293
    %v2383 = vcombine.high %v2291, %v2293
    %v2384 = vcombine.low %v2332, %v2334
    %v2385 = vcombine.high %v2332, %v2334
    %v2387 = vunpack.c.l.s4 1983009808
    %v2388 = vunpack.c.0.s8 %v2387
    %v2389 = vlaneseq
    %v2390 = vshrl.u32 %v2389, 7
    %v2391 = vsub.s32 %v2388, %v2390
    %v2392 = vrot.slane %v2382, %v2391
    %v2394 = vunpack.c.l.s4 1983009808
    %v2395 = vunpack.c.0.s8 %v2394
    %v2396 = vlaneseq
    %v2397 = vshrl.u32 %v2396, 7
    %v2398 = vsub.s32 %v2395, %v2397
    %v2399 = vrot.slane %v2383, %v2398
    %v2401 = vunpack.c.l.s4 1983009808
    %v2402 = vunpack.c.0.s8 %v2401
    %v2403 = vlaneseq
    %v2404 = vshrl.u32 %v2403, 7
    %v2405 = vsub.s32 %v2402, %v2404
    %v2406 = vrot.slane %v2384, %v2405
    %v2408 = vunpack.c.l.s4 1983009808
    %v2409 = vunpack.c.0.s8 %v2408
    %v2410 = vlaneseq
    %v2411 = vshrl.u32 %v2410, 7
    %v2412 = vsub.s32 %v2409, %v2411
    %v2413 = vrot.slane %v2385, %v2412
    %v2414 = vcombine.low %v2392, %v2406
    %v2415 = vcombine.high %v2392, %v2406
    %v2416 = vcombine.low %v2399, %v2413
    %v2417 = vcombine.high %v2399, %v2413
    %2426 = vst [vmem:[#allocation7] sm:$0xff] %v2378
    %2427 = vst [vmem:[#allocation7 + $0x8] sm:$0xff] %v2414
    %2428 = vst [vmem:[#allocation7 + $0x10] sm:$0xff] %v2379
    %2429 = vst [vmem:[#allocation7 + $0x18] sm:$0xff] %v2415
    %2430 = vst [vmem:[#allocation7 + $0x20] sm:$0xff] %v2380
    %2431 = vst [vmem:[#allocation7 + $0x28] sm:$0xff] %v2416
    %2432 = vst [vmem:[#allocation7 + $0x30] sm:$0xff] %v2381
    %2433 = vst [vmem:[#allocation7 + $0x38] sm:$0xff] %v2417
    // Predicated region
    $region42: #{linear_network_forward.1} parent=1 // pred_check
      _
    $region43: #{linear_network_forward.1} parent=1 // pred_check_branch
      %2435 = sbr.rel (0) target = $region45
    $region44: #{linear_network_forward.1} parent=1 // pred_region
      // Predicated region
      $region46: #{linear_network_forward.1} parent=44 // pred_check
        _
      $region47: #{linear_network_forward.1} parent=44 // pred_check_branch
        %2437 = sbr.rel (0) target = $region49
      $region48: #{linear_network_forward.1} parent=44 // pred_region
        // Predicated region
        $region50: #{linear_network_forward.1} parent=48 // pred_check
          _
        $region51: #{linear_network_forward.1} parent=48 // pred_check_branch
          %2439 = sbr.rel (0) target = $region53
        $region52: #{linear_network_forward.1} parent=48 // pred_region
          loop: start=0, step=1, limit=1
          $region54: #{linear_network_forward.1} parent=52 // loop_pre_header
            _
          $region55: #{linear_network_forward.1} parent=52 // loop_header
            %s2441 = sphi 0, %s2445
            %p2442 = scmp.ge.s32.totalorder %s2441, 1
            %s2446 = sphi [#allocation7], [#allocation7]
            %s2447 = sphi %s7, %s7
          $region56: #{linear_network_forward.1} parent=52 // loop_header_branch
            %2444 = sbr.rel (%p2442) target = $region60
          $region57: #{linear_network_forward.1} parent=52 // loop_body
            %v2448 = vld [vmem:[%s2446] sm:$0xff]
            %2449 = vst [vmem:[%s2447] sm:$0xff] %v2448
            %v2450 = vld [vmem:[%s2446 + $0x8] sm:$0xff]
            %2451 = vst [vmem:[%s2447 + $0x8] sm:$0xff] %v2450
          $region58: #{linear_network_forward.1} parent=52 // loop_footer
            %s2445 = sadd.s32 1, %s2441
          $region59: #{linear_network_forward.1} parent=52 // loop_footer_branch
            %2440 = sbr.rel target = $region55
          $region60: #{linear_network_forward.1} parent=52 // loop_exit
            _
        $region53: #{linear_network_forward.1} parent=48 // pred_fallthru
          _
        // Predicated region
        $region61: #{linear_network_forward.1} parent=48 // pred_check
          _
        $region62: #{linear_network_forward.1} parent=48 // pred_check_branch
          %2453 = sbr.rel target = $region64
        $region63: #{linear_network_forward.1} parent=48 // pred_region
          _
        $region64: #{linear_network_forward.1} parent=48 // pred_fallthru
          _
      $region49: #{linear_network_forward.1} parent=44 // pred_fallthru
        _
      %2454 = vnop
    $region45: #{linear_network_forward.1} parent=1 // pred_fallthru
      _
    // Predicated region
    $region65: #{linear_network_forward.1} parent=1 // pred_check
      _
    $region66: #{linear_network_forward.1} parent=1 // pred_check_branch
      %2456 = sbr.rel (0) target = $region68
    $region67: #{linear_network_forward.1} parent=1 // pred_region
      _
    $region68: #{linear_network_forward.1} parent=1 // pred_fallthru
      _
    %2457 = vsyncpa [#allocation3], 1
    %2458 = vsyncpa [#allocation5], 1

</llo_original>
